<compile_context>
chip_gen: v7x
topology: tpu7x:2x2x1
jax: 0.10.0
libtpu: 0.0.40
codegen_flags: <defaults>
</compile_context>

<pallas_src>
import jax
import jax.numpy as jnp
from jax.experimental import pallas as pl
from jax.experimental.pallas import tpu as pltpu

LANE = 128


def _pad128(n):
    return ((n + LANE - 1) // LANE) * LANE


# ----------------------------------------------------------------------------
# Kernel
# ----------------------------------------------------------------------------
def make_ple_kernel(layers_num, task_num, spec, shared, hidden_dims, tower_dims):
    n_tower = len(tower_dims) + 1          # hidden tower levels + final Linear(.,1)
    n_task_gate = spec + shared
    n_share_gate = task_num * spec + shared
    GTB = _pad128(n_task_gate)             # padded task-gate block width

    def kernel(x_ref, *refs):
        # ---- unpack refs (order must match build_fused_params) -------------
        idx = 0
        w_layer, b_layer = [], []
        for _ in range(layers_num):
            w_layer.append(refs[idx]); b_layer.append(refs[idx + 1]); idx += 2
        w_tower, b_tower = [], []
        for _ in range(n_tower):
            w_tower.append(refs[idx]); b_tower.append(refs[idx + 1]); idx += 2
        out_ref = refs[idx]

        def softmax(z):
            m = jnp.max(z, axis=-1, keepdims=True)
            e = jnp.exp(z - m)
            s = jnp.sum(e, axis=-1, keepdims=True)
            return e * pl.reciprocal(s, approx=True)   # EUP slot, VALU-free

        feat = x_ref[...]                              # (TB, input_dim), f32

        # ---- PLE extraction layers: ONE wide (block-diag) matmul per layer --
        for i in range(layers_num):
            last = (i == layers_num - 1)
            H = hidden_dims[i]
            PH = _pad128(H)
            task_w = spec * PH + GTB                   # per-task column block
            w = w_layer[i][...]
            z = (jnp.dot(feat.astype(w.dtype), w,
                         preferred_element_type=jnp.float32)
                 + b_layer[i][...])                    # (TB, TOT_i)

            sbase = task_num * task_w
            # shared experts (lane-aligned, vreg-width slices)
            sh = [jnp.maximum(z[:, sbase + k * PH: sbase + (k + 1) * PH], 0.0)
                  for k in range(shared)]

            spec_blocks = []
            new_feats = []
            for j in range(task_num):
                base = j * task_w
                sp = [jnp.maximum(z[:, base + k * PH: base + (k + 1) * PH], 0.0)
                      for k in range(spec)]
                spec_blocks.append(sp)
                g = softmax(z[:, base + spec * PH: base + spec * PH + n_task_gate])
                acc = g[:, 0:1] * sp[0]
                for k in range(1, spec):
                    acc = acc + g[:, k:k + 1] * sp[k]
                for k in range(shared):
                    acc = acc + g[:, spec + k:spec + k + 1] * sh[k]
                new_feats.append(acc)                  # (TB, PH), pad cols stay 0

            if not last:
                gstart = sbase + shared * PH
                g = softmax(z[:, gstart: gstart + n_share_gate])
                col = 0
                acc = None
                for j in range(task_num):
                    for k in range(spec):
                        t = g[:, col:col + 1] * spec_blocks[j][k]
                        acc = t if acc is None else acc + t
                        col += 1
                for k in range(shared):
                    acc = acc + g[:, col:col + 1] * sh[k]
                    col += 1
                new_feats.append(acc)

            # lane-concat of 128-aligned blocks; feeds the next block-diag dot
            feat = jnp.concatenate(new_feats, axis=1)

        # ---- towers: block-diag across tasks, two fused dots -----------------
        h = feat                                       # (TB, task_num*PH_last)
        for l in range(n_tower - 1):
            w = w_tower[l][...]
            h = jnp.maximum(jnp.dot(h.astype(w.dtype), w,
                                    preferred_element_type=jnp.float32)
                            + b_tower[l][...], 0.0)
        w = w_tower[n_tower - 1][...]
        out = (jnp.dot(h.astype(w.dtype), w, preferred_element_type=jnp.float32)
               + b_tower[n_tower - 1][...])            # (TB, task_num)
        out_ref[...] = out.astype(out_ref.dtype)       # single slab store

    return kernel


# ----------------------------------------------------------------------------
# Parameter init (PyTorch-style raw params)
# ----------------------------------------------------------------------------
class _KeyGen:
    def __init__(self, key):
        self.key = key

    def __call__(self):
        self.key, sub = jax.random.split(self.key)
        return sub


def _linear(key, in_dim, out_dim, scale=0.1):
    kw, kb = jax.random.split(key)
    return {"w": scale * jax.random.normal(kw, (out_dim, in_dim), jnp.float32),
            "b": scale * jax.random.normal(kb, (out_dim,), jnp.float32)}


def _bn(key, dim):
    k1, k2, k3, k4 = jax.random.split(key, 4)
    return {"gamma": 1.0 + 0.1 * jax.random.normal(k1, (dim,), jnp.float32),
            "beta": 0.1 * jax.random.normal(k2, (dim,), jnp.float32),
            "mean": 0.1 * jax.random.normal(k3, (dim,), jnp.float32),
            "var": 1.0 + 0.1 * jnp.abs(jax.random.normal(k4, (dim,), jnp.float32))}


def init_ple_params(key, input_dim, hidden_dims, tower_dims, task_num, spec, shared):
    kg = _KeyGen(key)
    layers_num = len(hidden_dims)
    raw = {"share_experts": [], "share_gates": [],
           "task_experts": [], "task_gates": [], "towers": []}
    for i in range(layers_num):
        in_i = input_dim if i == 0 else hidden_dims[i - 1]
        H = hidden_dims[i]
        raw["share_experts"].append(
            [{"lin": _linear(kg(), in_i, H), "bn": _bn(kg(), H)} for _ in range(shared)])
        raw["share_gates"].append(_linear(kg(), in_i, shared + task_num * spec))
        raw["task_experts"].append(
            [[{"lin": _linear(kg(), in_i, H), "bn": _bn(kg(), H)} for _ in range(spec)]
             for _ in range(task_num)])
        raw["task_gates"].append([_linear(kg(), in_i, spec + shared) for _ in range(task_num)])
    for _ in range(task_num):
        hid, t_in = [], hidden_dims[-1]
        for td in tower_dims:
            hid.append({"lin": _linear(kg(), t_in, td), "bn": _bn(kg(), td)})
            t_in = td
        raw["towers"].append({"hidden": hid, "out": _linear(kg(), t_in, 1)})
    return raw


def _fold(lin, bn, eps=1e-5):
    """Fold eval-mode BatchNorm1d into the preceding Linear; returns (in,out) W."""
    scale = bn["gamma"] / jnp.sqrt(bn["var"] + eps)
    w_eff = (lin["w"] * scale[:, None]).T              # (in, out)
    b_eff = (lin["b"] - bn["mean"]) * scale + bn["beta"]
    return w_eff, b_eff


# ----------------------------------------------------------------------------
# Fused, 128-lane-aligned, block-diagonal weight construction
# ----------------------------------------------------------------------------
def build_fused_params(raw, input_dim, hidden_dims, tower_dims, task_num, spec,
                       shared, weight_dtype=jnp.float32):
    layers_num = len(hidden_dims)
    n_task_gate = spec + shared
    n_share_gate = task_num * spec + shared
    GTB = _pad128(n_task_gate)
    fused = []

    for i in range(layers_num):
        last = (i == layers_num - 1)
        H = hidden_dims[i]
        PH = _pad128(H)
        task_w = spec * PH + GTB
        tot = task_num * task_w + shared * PH + (0 if last else _pad128(n_share_gate))
        if i == 0:
            K = input_dim
            PH_prev = None
        else:
            PH_prev = _pad128(hidden_dims[i - 1])
            K = (task_num + 1) * PH_prev

        W = jnp.zeros((K, tot), jnp.float32)
        b = jnp.zeros((1, tot), jnp.float32)

        def rows_for_branch(branch):
            if i == 0:
                return 0, input_dim
            r0 = branch * PH_prev
            return r0, r0 + hidden_dims[i - 1]

        # task branches: [specific experts (128-padded each) | task gate block]
        for j in range(task_num):
            r0, r1 = rows_for_branch(j)
            base = j * task_w
            for k in range(spec):
                w_e, b_e = _fold(raw["task_experts"][i][j][k]["lin"],
                                 raw["task_experts"][i][j][k]["bn"])
                W = W.at[r0:r1, base + k * PH: base + k * PH + H].set(w_e)
                b = b.at[0, base + k * PH: base + k * PH + H].set(b_e)
            gate = raw["task_gates"][i][j]
            gcol = base + spec * PH
            W = W.at[r0:r1, gcol:gcol + n_task_gate].set(gate["w"].T)
            b = b.at[0, gcol:gcol + n_task_gate].set(gate["b"])

        # shared branch: [shared experts | share gate (non-last layers only)]
        r0, r1 = rows_for_branch(task_num)
        sbase = task_num * task_w
        for k in range(shared):
            w_e, b_e = _fold(raw["share_experts"][i][k]["lin"],
                             raw["share_experts"][i][k]["bn"])
            W = W.at[r0:r1, sbase + k * PH: sbase + k * PH + H].set(w_e)
            b = b.at[0, sbase + k * PH: sbase + k * PH + H].set(b_e)
        if not last:
            sg = raw["share_gates"][i]
            gcol = sbase + shared * PH
            W = W.at[r0:r1, gcol:gcol + n_share_gate].set(sg["w"].T)
            b = b.at[0, gcol:gcol + n_share_gate].set(sg["b"])

        fused.append(W.astype(weight_dtype))
        fused.append(b)                                 # bias stays f32

    # towers: block-diagonal across tasks, one (W, b) per tower level
    H_last = hidden_dims[-1]
    PH_last = _pad128(H_last)
    dims = list(tower_dims)
    n_tower = len(dims) + 1
    for l in range(n_tower):
        if l == 0:
            in_per, in_pad = H_last, PH_last
        else:
            in_per, in_pad = dims[l - 1], dims[l - 1]
        out_per = dims[l] if l < n_tower - 1 else 1
        W = jnp.zeros((task_num * in_pad, task_num * out_per), jnp.float32)
        b = jnp.zeros((1, task_num * out_per), jnp.float32)
        for j in range(task_num):
            if l < n_tower - 1:
                w_e, b_e = _fold(raw["towers"][j]["hidden"][l]["lin"],
                                 raw["towers"][j]["hidden"][l]["bn"])
            else:
                w_e = raw["towers"][j]["out"]["w"].T    # (in, 1)
                b_e = raw["towers"][j]["out"]["b"]
            r0 = j * in_pad
            W = W.at[r0:r0 + in_per, j * out_per:(j + 1) * out_per].set(w_e)
            b = b.at[0, j * out_per:(j + 1) * out_per].set(b_e)
        fused.append(W.astype(weight_dtype))
        fused.append(b)
    return fused


# ----------------------------------------------------------------------------
# Pallas wrapper
# ----------------------------------------------------------------------------
def ple_forward(embed_x, raw, hidden_dims, tower_dims, task_num, spec, shared,
                tb=8, weight_dtype=jnp.float32):
    B, input_dim = embed_x.shape
    assert B % tb == 0, "batch must be a multiple of the batch tile"
    layers_num = len(hidden_dims)

    fused = build_fused_params(raw, input_dim, hidden_dims, tower_dims,
                               task_num, spec, shared, weight_dtype)

    in_specs = [pl.BlockSpec((tb, input_dim), lambda i: (i, 0))]
    for arr in fused:
        # full-block, constant index map -> weight stays resident in VMEM
        in_specs.append(pl.BlockSpec(arr.shape, lambda i: (0, 0)))

    kernel = make_ple_kernel(layers_num, task_num, spec, shared,
                             tuple(hidden_dims), tuple(tower_dims))

    return pl.pallas_call(
        kernel,
        out_shape=jax.ShapeDtypeStruct((B, task_num), jnp.float32),
        grid_spec=pltpu.PrefetchScalarGridSpec(
            num_scalar_prefetch=0,
            grid=(B // tb,),
            in_specs=in_specs,
            out_specs=pl.BlockSpec((tb, task_num), lambda i: (i, 0)),
        ),
        compiler_params=pltpu.CompilerParams(
            dimension_semantics=("parallel",),
            vmem_limit_bytes=32 * 1024 * 1024,
        ),
    )(embed_x, *fused)


# ----------------------------------------------------------------------------
# Pure-JAX reference mirroring the PyTorch forward (eval-mode BN, no dropout)
# ----------------------------------------------------------------------------
def _expert_ref(x, p, eps=1e-5):
    lin, bn = p["lin"], p["bn"]
    h = x @ lin["w"].T + lin["b"]
    h = (h - bn["mean"]) * (bn["gamma"] / jnp.sqrt(bn["var"] + eps)) + bn["beta"]
    return jnp.maximum(h, 0.0)


def _tower_ref(x, p):
    h = x
    for lvl in p["hidden"]:
        h = _expert_ref(h, lvl)
    return h @ p["out"]["w"].T + p["out"]["b"]


def ple_reference(embed_x, raw, layers_num, task_num, spec, shared):
    task_fea = [embed_x for _ in range(task_num + 1)]
    for i in range(layers_num):
        share_output = [_expert_ref(task_fea[-1], p)[:, None, :]
                        for p in raw["share_experts"][i]]
        task_output_list = []
        for j in range(task_num):
            task_output = [_expert_ref(task_fea[j], p)[:, None, :]
                           for p in raw["task_experts"][i][j]]
            task_output_list.extend(task_output)
            mix = jnp.concatenate(task_output + share_output, axis=1)
            gl = task_fea[j] @ raw["task_gates"][i][j]["w"].T + raw["task_gates"][i][j]["b"]
            gate = jax.nn.softmax(gl, axis=1)[:, None, :]
            task_fea[j] = jnp.matmul(gate, mix)[:, 0, :]
        if i != layers_num - 1:
            gl = task_fea[-1] @ raw["share_gates"][i]["w"].T + raw["share_gates"][i]["b"]
            gate = jax.nn.softmax(gl, axis=1)[:, None, :]
            mix = jnp.concatenate(task_output_list + share_output, axis=1)
            task_fea[-1] = jnp.matmul(gate, mix)[:, 0, :]
    return jnp.concatenate([_tower_ref(task_fea[j], raw["towers"][j])
                            for j in range(task_num)], axis=1)


# ----------------------------------------------------------------------------
if __name__ == "__main__":
    # PLELayer config: expert_num=4 (2 shared + 2 specific), 2 PLE layers,
    # 2 tasks, towers [16] -> Linear(.,1).  embed_x: (B, input_dim).
    B = 16
    input_dim = 32
    hidden_dims = [32, 32]
    tower_dims = [16]
    task_num = 2
    expert_num = 4
    shared = expert_num // 2
    spec = expert_num // 2
    # Toy batch: tb=8 -> grid=(2,), even, so both v7x TensorCores get a step.
    # For production batches raise tb to 128-512 (VMEM residency is ~2 MB here).
    TB = 8

    key = jax.random.PRNGKey(0)
    kx, kp = jax.random.split(key)
    embed_x = jax.random.normal(kx, (B, input_dim), jnp.float32)
    raw = init_ple_params(kp, input_dim, hidden_dims, tower_dims, task_num, spec, shared)

    out = ple_forward(embed_x, raw, hidden_dims, tower_dims, task_num, spec, shared,
                      tb=TB, weight_dtype=jnp.float32)  # use jnp.bfloat16 on v6e/v7x
    out = jax.block_until_ready(out)

    ref = ple_reference(embed_x, raw, len(hidden_dims), task_num, spec, shared)
    assert out.shape == (B, task_num)
    assert jnp.allclose(out, ref, atol=2e-3, rtol=2e-3), (out, ref)
    print("KERNEL_OK")
</pallas_src>

<mosaic_0001>
module attributes {stable_mosaic.version = 11 : i64} {
  func.func @kernel(%arg0: i32, %arg1: memref<8x32xf32, #tpu.memory_space<vmem>>, %arg2: memref<32x1152xf32, #tpu.memory_space<vmem>>, %arg3: memref<1x1152xf32, #tpu.memory_space<vmem>>, %arg4: memref<384x1024xf32, #tpu.memory_space<vmem>>, %arg5: memref<1x1024xf32, #tpu.memory_space<vmem>>, %arg6: memref<256x32xf32, #tpu.memory_space<vmem>>, %arg7: memref<1x32xf32, #tpu.memory_space<vmem>>, %arg8: memref<32x2xf32, #tpu.memory_space<vmem>>, %arg9: memref<1x2xf32, #tpu.memory_space<vmem>>, %arg10: memref<8x2xf32, #tpu.memory_space<vmem>>) attributes {dimension_semantics = [#tpu.dimension_semantics<parallel>], iteration_bounds = array<i64: 2>, scalar_prefetch = 0 : i64, scratch_operands = 0 : i64, tpu.core_type = #tpu.core_type<tc>, window_params = [{transform_indices = @transform_0, window_bounds = array<i64: 8, 32>}, {pipeline_mode = #tpu.pipeline_mode<synchronous>, transform_indices = @transform_1, window_bounds = array<i64: 32, 1152>}, {pipeline_mode = #tpu.pipeline_mode<synchronous>, transform_indices = @transform_2, window_bounds = array<i64: 1, 1152>}, {pipeline_mode = #tpu.pipeline_mode<synchronous>, transform_indices = @transform_3, window_bounds = array<i64: 384, 1024>}, {pipeline_mode = #tpu.pipeline_mode<synchronous>, transform_indices = @transform_4, window_bounds = array<i64: 1, 1024>}, {pipeline_mode = #tpu.pipeline_mode<synchronous>, transform_indices = @transform_5, window_bounds = array<i64: 256, 32>}, {pipeline_mode = #tpu.pipeline_mode<synchronous>, transform_indices = @transform_6, window_bounds = array<i64: 1, 32>}, {pipeline_mode = #tpu.pipeline_mode<synchronous>, transform_indices = @transform_7, window_bounds = array<i64: 32, 2>}, {pipeline_mode = #tpu.pipeline_mode<synchronous>, transform_indices = @transform_8, window_bounds = array<i64: 1, 2>}, {transform_indices = @transform_9, window_bounds = array<i64: 8, 2>}]} {
    %c0 = arith.constant 0 : index
    %c0_0 = arith.constant 0 : index
    %0 = vector.load %arg1[%c0, %c0_0] : memref<8x32xf32, #tpu.memory_space<vmem>>, vector<8x32xf32>
    %c0_1 = arith.constant 0 : index
    %c0_2 = arith.constant 0 : index
    %1 = vector.load %arg2[%c0_1, %c0_2] : memref<32x1152xf32, #tpu.memory_space<vmem>>, vector<32x1152xf32>
    %cst = arith.constant dense<0.000000e+00> : vector<8x1152xf32>
    %2 = tpu.matmul %0, %1, %cst {dimension_numbers = #tpu.dot_dimension_numbers<[1], [0], [0], [1], [0, 0, 1, 1], [], []>} : vector<8x32xf32>, vector<32x1152xf32>, vector<8x1152xf32> -> vector<8x1152xf32>
    %c0_3 = arith.constant 0 : index
    %c0_4 = arith.constant 0 : index
    %3 = vector.load %arg3[%c0_3, %c0_4] : memref<1x1152xf32, #tpu.memory_space<vmem>>, vector<1x1152xf32>
    %4 = vector.broadcast %3 : vector<1x1152xf32> to vector<8x1152xf32>
    %5 = arith.addf %2, %4 : vector<8x1152xf32>
    %6 = vector.extract_strided_slice %5 {offsets = [0, 768], sizes = [8, 128], strides = [1, 1]} : vector<8x1152xf32> to vector<8x128xf32>
    %cst_5 = arith.constant 0.000000e+00 : f32
    %7 = vector.broadcast %cst_5 : f32 to vector<8x128xf32>
    %8 = arith.maximumf %6, %7 : vector<8x128xf32>
    %9 = vector.extract_strided_slice %5 {offsets = [0, 896], sizes = [8, 128], strides = [1, 1]} : vector<8x1152xf32> to vector<8x128xf32>
    %cst_6 = arith.constant 0.000000e+00 : f32
    %10 = vector.broadcast %cst_6 : f32 to vector<8x128xf32>
    %11 = arith.maximumf %9, %10 : vector<8x128xf32>
    %12 = vector.extract_strided_slice %5 {offsets = [0, 0], sizes = [8, 128], strides = [1, 1]} : vector<8x1152xf32> to vector<8x128xf32>
    %cst_7 = arith.constant 0.000000e+00 : f32
    %13 = vector.broadcast %cst_7 : f32 to vector<8x128xf32>
    %14 = arith.maximumf %12, %13 : vector<8x128xf32>
    %15 = vector.extract_strided_slice %5 {offsets = [0, 128], sizes = [8, 128], strides = [1, 1]} : vector<8x1152xf32> to vector<8x128xf32>
    %cst_8 = arith.constant 0.000000e+00 : f32
    %16 = vector.broadcast %cst_8 : f32 to vector<8x128xf32>
    %17 = arith.maximumf %15, %16 : vector<8x128xf32>
    %18 = vector.extract_strided_slice %5 {offsets = [0, 256], sizes = [8, 4], strides = [1, 1]} : vector<8x1152xf32> to vector<8x4xf32>
    %cst_9 = arith.constant dense<0xFF800000> : vector<8xf32>
    %19 = vector.multi_reduction <maximumf>, %18, %cst_9 [1] : vector<8x4xf32> to vector<8xf32>
    %20 = vector.shape_cast %19 : vector<8xf32> to vector<8x1xf32>
    %21 = vector.broadcast %20 : vector<8x1xf32> to vector<8x4xf32>
    %22 = arith.subf %18, %21 : vector<8x4xf32>
    %23 = math.exp %22 : vector<8x4xf32>
    %cst_10 = arith.constant dense<0.000000e+00> : vector<8xf32>
    %24 = vector.multi_reduction <add>, %23, %cst_10 [1] : vector<8x4xf32> to vector<8xf32>
    %25 = vector.shape_cast %24 : vector<8xf32> to vector<8x1xf32>
    %26 = tpu.reciprocal %25 {approx = true} : vector<8x1xf32> -> vector<8x1xf32>
    %27 = vector.broadcast %26 : vector<8x1xf32> to vector<8x4xf32>
    %28 = arith.mulf %23, %27 : vector<8x4xf32>
    %29 = vector.extract_strided_slice %28 {offsets = [0, 0], sizes = [8, 1], strides = [1, 1]} : vector<8x4xf32> to vector<8x1xf32>
    %30 = vector.broadcast %29 : vector<8x1xf32> to vector<8x128xf32>
    %31 = arith.mulf %30, %14 : vector<8x128xf32>
    %32 = vector.extract_strided_slice %28 {offsets = [0, 1], sizes = [8, 1], strides = [1, 1]} : vector<8x4xf32> to vector<8x1xf32>
    %33 = vector.broadcast %32 : vector<8x1xf32> to vector<8x128xf32>
    %34 = arith.mulf %33, %17 : vector<8x128xf32>
    %35 = arith.addf %31, %34 : vector<8x128xf32>
    %36 = vector.extract_strided_slice %28 {offsets = [0, 2], sizes = [8, 1], strides = [1, 1]} : vector<8x4xf32> to vector<8x1xf32>
    %37 = vector.broadcast %36 : vector<8x1xf32> to vector<8x128xf32>
    %38 = arith.mulf %37, %8 : vector<8x128xf32>
    %39 = arith.addf %35, %38 : vector<8x128xf32>
    %40 = vector.extract_strided_slice %28 {offsets = [0, 3], sizes = [8, 1], strides = [1, 1]} : vector<8x4xf32> to vector<8x1xf32>
    %41 = vector.broadcast %40 : vector<8x1xf32> to vector<8x128xf32>
    %42 = arith.mulf %41, %11 : vector<8x128xf32>
    %43 = arith.addf %39, %42 : vector<8x128xf32>
    %44 = vector.extract_strided_slice %5 {offsets = [0, 384], sizes = [8, 128], strides = [1, 1]} : vector<8x1152xf32> to vector<8x128xf32>
    %cst_11 = arith.constant 0.000000e+00 : f32
    %45 = vector.broadcast %cst_11 : f32 to vector<8x128xf32>
    %46 = arith.maximumf %44, %45 : vector<8x128xf32>
    %47 = vector.extract_strided_slice %5 {offsets = [0, 512], sizes = [8, 128], strides = [1, 1]} : vector<8x1152xf32> to vector<8x128xf32>
    %cst_12 = arith.constant 0.000000e+00 : f32
    %48 = vector.broadcast %cst_12 : f32 to vector<8x128xf32>
    %49 = arith.maximumf %47, %48 : vector<8x128xf32>
    %50 = vector.extract_strided_slice %5 {offsets = [0, 640], sizes = [8, 4], strides = [1, 1]} : vector<8x1152xf32> to vector<8x4xf32>
    %cst_13 = arith.constant dense<0xFF800000> : vector<8xf32>
    %51 = vector.multi_reduction <maximumf>, %50, %cst_13 [1] : vector<8x4xf32> to vector<8xf32>
    %52 = vector.shape_cast %51 : vector<8xf32> to vector<8x1xf32>
    %53 = vector.broadcast %52 : vector<8x1xf32> to vector<8x4xf32>
    %54 = arith.subf %50, %53 : vector<8x4xf32>
    %55 = math.exp %54 : vector<8x4xf32>
    %cst_14 = arith.constant dense<0.000000e+00> : vector<8xf32>
    %56 = vector.multi_reduction <add>, %55, %cst_14 [1] : vector<8x4xf32> to vector<8xf32>
    %57 = vector.shape_cast %56 : vector<8xf32> to vector<8x1xf32>
    %58 = tpu.reciprocal %57 {approx = true} : vector<8x1xf32> -> vector<8x1xf32>
    %59 = vector.broadcast %58 : vector<8x1xf32> to vector<8x4xf32>
    %60 = arith.mulf %55, %59 : vector<8x4xf32>
    %61 = vector.extract_strided_slice %60 {offsets = [0, 0], sizes = [8, 1], strides = [1, 1]} : vector<8x4xf32> to vector<8x1xf32>
    %62 = vector.broadcast %61 : vector<8x1xf32> to vector<8x128xf32>
    %63 = arith.mulf %62, %46 : vector<8x128xf32>
    %64 = vector.extract_strided_slice %60 {offsets = [0, 1], sizes = [8, 1], strides = [1, 1]} : vector<8x4xf32> to vector<8x1xf32>
    %65 = vector.broadcast %64 : vector<8x1xf32> to vector<8x128xf32>
    %66 = arith.mulf %65, %49 : vector<8x128xf32>
    %67 = arith.addf %63, %66 : vector<8x128xf32>
    %68 = vector.extract_strided_slice %60 {offsets = [0, 2], sizes = [8, 1], strides = [1, 1]} : vector<8x4xf32> to vector<8x1xf32>
    %69 = vector.broadcast %68 : vector<8x1xf32> to vector<8x128xf32>
    %70 = arith.mulf %69, %8 : vector<8x128xf32>
    %71 = arith.addf %67, %70 : vector<8x128xf32>
    %72 = vector.extract_strided_slice %60 {offsets = [0, 3], sizes = [8, 1], strides = [1, 1]} : vector<8x4xf32> to vector<8x1xf32>
    %73 = vector.broadcast %72 : vector<8x1xf32> to vector<8x128xf32>
    %74 = arith.mulf %73, %11 : vector<8x128xf32>
    %75 = arith.addf %71, %74 : vector<8x128xf32>
    %76 = vector.extract_strided_slice %5 {offsets = [0, 1024], sizes = [8, 6], strides = [1, 1]} : vector<8x1152xf32> to vector<8x6xf32>
    %cst_15 = arith.constant dense<0xFF800000> : vector<8xf32>
    %77 = vector.multi_reduction <maximumf>, %76, %cst_15 [1] : vector<8x6xf32> to vector<8xf32>
    %78 = vector.shape_cast %77 : vector<8xf32> to vector<8x1xf32>
    %79 = vector.broadcast %78 : vector<8x1xf32> to vector<8x6xf32>
    %80 = arith.subf %76, %79 : vector<8x6xf32>
    %81 = math.exp %80 : vector<8x6xf32>
    %cst_16 = arith.constant dense<0.000000e+00> : vector<8xf32>
    %82 = vector.multi_reduction <add>, %81, %cst_16 [1] : vector<8x6xf32> to vector<8xf32>
    %83 = vector.shape_cast %82 : vector<8xf32> to vector<8x1xf32>
    %84 = tpu.reciprocal %83 {approx = true} : vector<8x1xf32> -> vector<8x1xf32>
    %85 = vector.broadcast %84 : vector<8x1xf32> to vector<8x6xf32>
    %86 = arith.mulf %81, %85 : vector<8x6xf32>
    %87 = vector.extract_strided_slice %86 {offsets = [0, 0], sizes = [8, 1], strides = [1, 1]} : vector<8x6xf32> to vector<8x1xf32>
    %88 = vector.broadcast %87 : vector<8x1xf32> to vector<8x128xf32>
    %89 = arith.mulf %88, %14 : vector<8x128xf32>
    %90 = vector.extract_strided_slice %86 {offsets = [0, 1], sizes = [8, 1], strides = [1, 1]} : vector<8x6xf32> to vector<8x1xf32>
    %91 = vector.broadcast %90 : vector<8x1xf32> to vector<8x128xf32>
    %92 = arith.mulf %91, %17 : vector<8x128xf32>
    %93 = arith.addf %89, %92 : vector<8x128xf32>
    %94 = vector.extract_strided_slice %86 {offsets = [0, 2], sizes = [8, 1], strides = [1, 1]} : vector<8x6xf32> to vector<8x1xf32>
    %95 = vector.broadcast %94 : vector<8x1xf32> to vector<8x128xf32>
    %96 = arith.mulf %95, %46 : vector<8x128xf32>
    %97 = arith.addf %93, %96 : vector<8x128xf32>
    %98 = vector.extract_strided_slice %86 {offsets = [0, 3], sizes = [8, 1], strides = [1, 1]} : vector<8x6xf32> to vector<8x1xf32>
    %99 = vector.broadcast %98 : vector<8x1xf32> to vector<8x128xf32>
    %100 = arith.mulf %99, %49 : vector<8x128xf32>
    %101 = arith.addf %97, %100 : vector<8x128xf32>
    %102 = vector.extract_strided_slice %86 {offsets = [0, 4], sizes = [8, 1], strides = [1, 1]} : vector<8x6xf32> to vector<8x1xf32>
    %103 = vector.broadcast %102 : vector<8x1xf32> to vector<8x128xf32>
    %104 = arith.mulf %103, %8 : vector<8x128xf32>
    %105 = arith.addf %101, %104 : vector<8x128xf32>
    %106 = vector.extract_strided_slice %86 {offsets = [0, 5], sizes = [8, 1], strides = [1, 1]} : vector<8x6xf32> to vector<8x1xf32>
    %107 = vector.broadcast %106 : vector<8x1xf32> to vector<8x128xf32>
    %108 = arith.mulf %107, %11 : vector<8x128xf32>
    %109 = arith.addf %105, %108 : vector<8x128xf32>
    %110 = tpu.concatenate %43, %75, %109 in 1 : vector<8x128xf32>, vector<8x128xf32>, vector<8x128xf32> -> vector<8x384xf32>
    %c0_17 = arith.constant 0 : index
    %c0_18 = arith.constant 0 : index
    %111 = vector.load %arg4[%c0_17, %c0_18] : memref<384x1024xf32, #tpu.memory_space<vmem>>, vector<384x1024xf32>
    %cst_19 = arith.constant dense<0.000000e+00> : vector<8x1024xf32>
    %112 = tpu.matmul %110, %111, %cst_19 {dimension_numbers = #tpu.dot_dimension_numbers<[1], [0], [0], [1], [0, 0, 1, 1], [], []>} : vector<8x384xf32>, vector<384x1024xf32>, vector<8x1024xf32> -> vector<8x1024xf32>
    %c0_20 = arith.constant 0 : index
    %c0_21 = arith.constant 0 : index
    %113 = vector.load %arg5[%c0_20, %c0_21] : memref<1x1024xf32, #tpu.memory_space<vmem>>, vector<1x1024xf32>
    %114 = vector.broadcast %113 : vector<1x1024xf32> to vector<8x1024xf32>
    %115 = arith.addf %112, %114 : vector<8x1024xf32>
    %116 = vector.extract_strided_slice %115 {offsets = [0, 768], sizes = [8, 128], strides = [1, 1]} : vector<8x1024xf32> to vector<8x128xf32>
    %cst_22 = arith.constant 0.000000e+00 : f32
    %117 = vector.broadcast %cst_22 : f32 to vector<8x128xf32>
    %118 = arith.maximumf %116, %117 : vector<8x128xf32>
    %119 = vector.extract_strided_slice %115 {offsets = [0, 896], sizes = [8, 128], strides = [1, 1]} : vector<8x1024xf32> to vector<8x128xf32>
    %cst_23 = arith.constant 0.000000e+00 : f32
    %120 = vector.broadcast %cst_23 : f32 to vector<8x128xf32>
    %121 = arith.maximumf %119, %120 : vector<8x128xf32>
    %122 = vector.extract_strided_slice %115 {offsets = [0, 0], sizes = [8, 128], strides = [1, 1]} : vector<8x1024xf32> to vector<8x128xf32>
    %cst_24 = arith.constant 0.000000e+00 : f32
    %123 = vector.broadcast %cst_24 : f32 to vector<8x128xf32>
    %124 = arith.maximumf %122, %123 : vector<8x128xf32>
    %125 = vector.extract_strided_slice %115 {offsets = [0, 128], sizes = [8, 128], strides = [1, 1]} : vector<8x1024xf32> to vector<8x128xf32>
    %cst_25 = arith.constant 0.000000e+00 : f32
    %126 = vector.broadcast %cst_25 : f32 to vector<8x128xf32>
    %127 = arith.maximumf %125, %126 : vector<8x128xf32>
    %128 = vector.extract_strided_slice %115 {offsets = [0, 256], sizes = [8, 4], strides = [1, 1]} : vector<8x1024xf32> to vector<8x4xf32>
    %cst_26 = arith.constant dense<0xFF800000> : vector<8xf32>
    %129 = vector.multi_reduction <maximumf>, %128, %cst_26 [1] : vector<8x4xf32> to vector<8xf32>
    %130 = vector.shape_cast %129 : vector<8xf32> to vector<8x1xf32>
    %131 = vector.broadcast %130 : vector<8x1xf32> to vector<8x4xf32>
    %132 = arith.subf %128, %131 : vector<8x4xf32>
    %133 = math.exp %132 : vector<8x4xf32>
    %cst_27 = arith.constant dense<0.000000e+00> : vector<8xf32>
    %134 = vector.multi_reduction <add>, %133, %cst_27 [1] : vector<8x4xf32> to vector<8xf32>
    %135 = vector.shape_cast %134 : vector<8xf32> to vector<8x1xf32>
    %136 = tpu.reciprocal %135 {approx = true} : vector<8x1xf32> -> vector<8x1xf32>
    %137 = vector.broadcast %136 : vector<8x1xf32> to vector<8x4xf32>
    %138 = arith.mulf %133, %137 : vector<8x4xf32>
    %139 = vector.extract_strided_slice %138 {offsets = [0, 0], sizes = [8, 1], strides = [1, 1]} : vector<8x4xf32> to vector<8x1xf32>
    %140 = vector.broadcast %139 : vector<8x1xf32> to vector<8x128xf32>
    %141 = arith.mulf %140, %124 : vector<8x128xf32>
    %142 = vector.extract_strided_slice %138 {offsets = [0, 1], sizes = [8, 1], strides = [1, 1]} : vector<8x4xf32> to vector<8x1xf32>
    %143 = vector.broadcast %142 : vector<8x1xf32> to vector<8x128xf32>
    %144 = arith.mulf %143, %127 : vector<8x128xf32>
    %145 = arith.addf %141, %144 : vector<8x128xf32>
    %146 = vector.extract_strided_slice %138 {offsets = [0, 2], sizes = [8, 1], strides = [1, 1]} : vector<8x4xf32> to vector<8x1xf32>
    %147 = vector.broadcast %146 : vector<8x1xf32> to vector<8x128xf32>
    %148 = arith.mulf %147, %118 : vector<8x128xf32>
    %149 = arith.addf %145, %148 : vector<8x128xf32>
    %150 = vector.extract_strided_slice %138 {offsets = [0, 3], sizes = [8, 1], strides = [1, 1]} : vector<8x4xf32> to vector<8x1xf32>
    %151 = vector.broadcast %150 : vector<8x1xf32> to vector<8x128xf32>
    %152 = arith.mulf %151, %121 : vector<8x128xf32>
    %153 = arith.addf %149, %152 : vector<8x128xf32>
    %154 = vector.extract_strided_slice %115 {offsets = [0, 384], sizes = [8, 128], strides = [1, 1]} : vector<8x1024xf32> to vector<8x128xf32>
    %cst_28 = arith.constant 0.000000e+00 : f32
    %155 = vector.broadcast %cst_28 : f32 to vector<8x128xf32>
    %156 = arith.maximumf %154, %155 : vector<8x128xf32>
    %157 = vector.extract_strided_slice %115 {offsets = [0, 512], sizes = [8, 128], strides = [1, 1]} : vector<8x1024xf32> to vector<8x128xf32>
    %cst_29 = arith.constant 0.000000e+00 : f32
    %158 = vector.broadcast %cst_29 : f32 to vector<8x128xf32>
    %159 = arith.maximumf %157, %158 : vector<8x128xf32>
    %160 = vector.extract_strided_slice %115 {offsets = [0, 640], sizes = [8, 4], strides = [1, 1]} : vector<8x1024xf32> to vector<8x4xf32>
    %cst_30 = arith.constant dense<0xFF800000> : vector<8xf32>
    %161 = vector.multi_reduction <maximumf>, %160, %cst_30 [1] : vector<8x4xf32> to vector<8xf32>
    %162 = vector.shape_cast %161 : vector<8xf32> to vector<8x1xf32>
    %163 = vector.broadcast %162 : vector<8x1xf32> to vector<8x4xf32>
    %164 = arith.subf %160, %163 : vector<8x4xf32>
    %165 = math.exp %164 : vector<8x4xf32>
    %cst_31 = arith.constant dense<0.000000e+00> : vector<8xf32>
    %166 = vector.multi_reduction <add>, %165, %cst_31 [1] : vector<8x4xf32> to vector<8xf32>
    %167 = vector.shape_cast %166 : vector<8xf32> to vector<8x1xf32>
    %168 = tpu.reciprocal %167 {approx = true} : vector<8x1xf32> -> vector<8x1xf32>
    %169 = vector.broadcast %168 : vector<8x1xf32> to vector<8x4xf32>
    %170 = arith.mulf %165, %169 : vector<8x4xf32>
    %171 = vector.extract_strided_slice %170 {offsets = [0, 0], sizes = [8, 1], strides = [1, 1]} : vector<8x4xf32> to vector<8x1xf32>
    %172 = vector.broadcast %171 : vector<8x1xf32> to vector<8x128xf32>
    %173 = arith.mulf %172, %156 : vector<8x128xf32>
    %174 = vector.extract_strided_slice %170 {offsets = [0, 1], sizes = [8, 1], strides = [1, 1]} : vector<8x4xf32> to vector<8x1xf32>
    %175 = vector.broadcast %174 : vector<8x1xf32> to vector<8x128xf32>
    %176 = arith.mulf %175, %159 : vector<8x128xf32>
    %177 = arith.addf %173, %176 : vector<8x128xf32>
    %178 = vector.extract_strided_slice %170 {offsets = [0, 2], sizes = [8, 1], strides = [1, 1]} : vector<8x4xf32> to vector<8x1xf32>
    %179 = vector.broadcast %178 : vector<8x1xf32> to vector<8x128xf32>
    %180 = arith.mulf %179, %118 : vector<8x128xf32>
    %181 = arith.addf %177, %180 : vector<8x128xf32>
    %182 = vector.extract_strided_slice %170 {offsets = [0, 3], sizes = [8, 1], strides = [1, 1]} : vector<8x4xf32> to vector<8x1xf32>
    %183 = vector.broadcast %182 : vector<8x1xf32> to vector<8x128xf32>
    %184 = arith.mulf %183, %121 : vector<8x128xf32>
    %185 = arith.addf %181, %184 : vector<8x128xf32>
    %186 = tpu.concatenate %153, %185 in 1 : vector<8x128xf32>, vector<8x128xf32> -> vector<8x256xf32>
    %c0_32 = arith.constant 0 : index
    %c0_33 = arith.constant 0 : index
    %187 = vector.load %arg6[%c0_32, %c0_33] : memref<256x32xf32, #tpu.memory_space<vmem>>, vector<256x32xf32>
    %cst_34 = arith.constant dense<0.000000e+00> : vector<8x32xf32>
    %188 = tpu.matmul %186, %187, %cst_34 {dimension_numbers = #tpu.dot_dimension_numbers<[1], [0], [0], [1], [0, 0, 1, 1], [], []>} : vector<8x256xf32>, vector<256x32xf32>, vector<8x32xf32> -> vector<8x32xf32>
    %c0_35 = arith.constant 0 : index
    %c0_36 = arith.constant 0 : index
    %189 = vector.load %arg7[%c0_35, %c0_36] : memref<1x32xf32, #tpu.memory_space<vmem>>, vector<1x32xf32>
    %190 = vector.broadcast %189 : vector<1x32xf32> to vector<8x32xf32>
    %191 = arith.addf %188, %190 : vector<8x32xf32>
    %cst_37 = arith.constant 0.000000e+00 : f32
    %192 = vector.broadcast %cst_37 : f32 to vector<8x32xf32>
    %193 = arith.maximumf %191, %192 : vector<8x32xf32>
    %c0_38 = arith.constant 0 : index
    %c0_39 = arith.constant 0 : index
    %194 = vector.load %arg8[%c0_38, %c0_39] : memref<32x2xf32, #tpu.memory_space<vmem>>, vector<32x2xf32>
    %cst_40 = arith.constant dense<0.000000e+00> : vector<8x2xf32>
    %195 = tpu.matmul %193, %194, %cst_40 {dimension_numbers = #tpu.dot_dimension_numbers<[1], [0], [0], [1], [0, 0, 1, 1], [], []>} : vector<8x32xf32>, vector<32x2xf32>, vector<8x2xf32> -> vector<8x2xf32>
    %c0_41 = arith.constant 0 : index
    %c0_42 = arith.constant 0 : index
    %196 = vector.load %arg9[%c0_41, %c0_42] : memref<1x2xf32, #tpu.memory_space<vmem>>, vector<1x2xf32>
    %197 = vector.broadcast %196 : vector<1x2xf32> to vector<8x2xf32>
    %198 = arith.addf %195, %197 : vector<8x2xf32>
    %c0_43 = arith.constant 0 : index
    %c0_44 = arith.constant 0 : index
    %199 = vector.load %arg10[%c0_43, %c0_44] : memref<8x2xf32, #tpu.memory_space<vmem>>, vector<8x2xf32>
    tpu.vector_store %arg10[%c0_43, %c0_44], %198 {strides = array<i32>} : memref<8x2xf32, #tpu.memory_space<vmem>>, vector<8x2xf32>,
    return
  }
  func.func @transform_0(%arg0: i32) -> (i32, i32) {
    %c0_i32 = arith.constant 0 : i32
    %c0_i32_0 = arith.constant 0 : i32
    return %arg0, %c0_i32 : i32, i32
  }
  func.func @transform_1(%arg0: i32) -> (i32, i32) {
    %c0_i32 = arith.constant 0 : i32
    %c0_i32_0 = arith.constant 0 : i32
    %c0_i32_1 = arith.constant 0 : i32
    return %c0_i32, %c0_i32_0 : i32, i32
  }
  func.func @transform_2(%arg0: i32) -> (i32, i32) {
    %c0_i32 = arith.constant 0 : i32
    %c0_i32_0 = arith.constant 0 : i32
    %c0_i32_1 = arith.constant 0 : i32
    return %c0_i32, %c0_i32_0 : i32, i32
  }
  func.func @transform_3(%arg0: i32) -> (i32, i32) {
    %c0_i32 = arith.constant 0 : i32
    %c0_i32_0 = arith.constant 0 : i32
    %c0_i32_1 = arith.constant 0 : i32
    return %c0_i32, %c0_i32_0 : i32, i32
  }
  func.func @transform_4(%arg0: i32) -> (i32, i32) {
    %c0_i32 = arith.constant 0 : i32
    %c0_i32_0 = arith.constant 0 : i32
    %c0_i32_1 = arith.constant 0 : i32
    return %c0_i32, %c0_i32_0 : i32, i32
  }
  func.func @transform_5(%arg0: i32) -> (i32, i32) {
    %c0_i32 = arith.constant 0 : i32
    %c0_i32_0 = arith.constant 0 : i32
    %c0_i32_1 = arith.constant 0 : i32
    return %c0_i32, %c0_i32_0 : i32, i32
  }
  func.func @transform_6(%arg0: i32) -> (i32, i32) {
    %c0_i32 = arith.constant 0 : i32
    %c0_i32_0 = arith.constant 0 : i32
    %c0_i32_1 = arith.constant 0 : i32
    return %c0_i32, %c0_i32_0 : i32, i32
  }
  func.func @transform_7(%arg0: i32) -> (i32, i32) {
    %c0_i32 = arith.constant 0 : i32
    %c0_i32_0 = arith.constant 0 : i32
    %c0_i32_1 = arith.constant 0 : i32
    return %c0_i32, %c0_i32_0 : i32, i32
  }
  func.func @transform_8(%arg0: i32) -> (i32, i32) {
    %c0_i32 = arith.constant 0 : i32
    %c0_i32_0 = arith.constant 0 : i32
    %c0_i32_1 = arith.constant 0 : i32
    return %c0_i32, %c0_i32_0 : i32, i32
  }
  func.func @transform_9(%arg0: i32) -> (i32, i32) {
    %c0_i32 = arith.constant 0 : i32
    %c0_i32_0 = arith.constant 0 : i32
    return %arg0, %c0_i32 : i32, i32
  }
}

</mosaic_0001>

<llo_original>
// kernel: tpu_custom_call.1
$region0: #{tpu_custom_call.1}
  #allocation0 [shape = 'u32[]', space=smem, size = 0x4, offset = 0x4, fixed_abs, tag = 'smem constant byte address 0x4 - core index']
  #allocation1 [shape = 'u32[144,128]{1,0:T(1,128)}', space=vmem, size = 0x12000, scoped, tag = 'internal scratch']
  %s0 = inlined_call_operand.hbm [shape: f32[16,32], index: 0, kind: input, shape index: {}]
  %s1 = inlined_call_operand.hbm [shape: f32[32,1152], index: 1, kind: input, shape index: {}]
  %s2 = inlined_call_operand.hbm [shape: f32[1,1152], index: 2, kind: input, shape index: {}]
  %s3 = inlined_call_operand.hbm [shape: f32[384,1024], index: 3, kind: input, shape index: {}]
  %s4 = inlined_call_operand.hbm [shape: f32[1,1024], index: 4, kind: input, shape index: {}]
  %s5 = inlined_call_operand.vmem [shape: f32[256,32], index: 5, kind: input, shape index: {}]
  %s6 = inlined_call_operand.hbm [shape: f32[1,32], index: 6, kind: input, shape index: {}]
  %s7 = inlined_call_operand.vmem [shape: f32[32,2], index: 7, kind: input, shape index: {}]
  %s8 = inlined_call_operand.hbm [shape: f32[1,2], index: 8, kind: input, shape index: {}]
  %s9 = inlined_call_operand.vmem [shape: f32[16,2], index: 9, kind: output, shape index: {}]
  %s10 = sld [smem:[#allocation0]]
  $region97: #{tpu_custom_call.1} parent=0
    _
  %s12 = ssub.s32 1, %s10
  %s13 = scalar_select 0, %s12, %s10
  $region1: #{tpu_custom_call.1} parent=0
    #allocation2 [shape = 'u8[8192]{0}', space=vmem, size = 0x2000, scoped, tag = 'input window, operand 0']
    #allocation3 [shape = 's32[2]{0}', space=sflag, size = 0x8, scoped, tag = 'scoped memory for tpu_custom_call.1']
    #allocation4 [shape = 'u8[147456]{0}', space=vmem, size = 0x24000, scoped, tag = 'input window, operand 1, single buffered']
    #allocation5 [shape = 's32[1]{0}', space=sflag, size = 0x4, scoped, tag = 'scoped memory for tpu_custom_call.1']
    #allocation6 [shape = 'u8[4608]{0}', space=vmem, size = 0x1400, scoped, tag = 'input window, operand 2, single buffered']
    #allocation7 [shape = 'u8[1572864]{0}', space=vmem, size = 0x180000, scoped, tag = 'input window, operand 3, single buffered']
    #allocation8 [shape = 's32[1]{0}', space=sflag, size = 0x4, scoped, tag = 'scoped memory for tpu_custom_call.1']
    #allocation9 [shape = 'u8[4096]{0}', space=vmem, size = 0x1000, scoped, tag = 'input window, operand 4, single buffered']
    #allocation10 [shape = 'u8[512]{0}', space=vmem, size = 0x400, scoped, tag = 'input window, operand 6, single buffered']
    #allocation11 [shape = 's32[1]{0}', space=sflag, size = 0x4, scoped, tag = 'scoped memory for tpu_custom_call.1']
    #allocation12 [shape = 'u8[512]{0}', space=vmem, size = 0x400, scoped, tag = 'input window, operand 8, single buffered']
    %14 = vsyncpa [#allocation3], 0
    %s15 = scalar_lea.sflag [#allocation3], 1
    %16 = vsyncpa %s15, 0
    %17 = vsyncpa [#allocation5], 0
    %18 = vsyncpa [#allocation8], 0
    %19 = vsyncpa [#allocation11], 0
    loop: start=0, step=1, limit=4
    $region2: #{tpu_custom_call.1} parent=1 // loop_pre_header
      _
    $region3: #{tpu_custom_call.1} parent=1 // loop_header
      %s21 = sphi 0, %s25
      %p22 = scmp.ge.s32.totalorder %s21, 4
      %s31 = sphi 0, %s33
      %s34 = sphi 0, %s31
      %s35 = sphi 0, %s34
      %s51 = sphi 0, %s35
      %s55 = sphi 0, %s55
      %s57 = sphi 0, %s55
      %s58 = sphi 0, %s57
      %s72 = sphi 0, %s58
      %s76 = sphi 0, %s76
      %s78 = sphi 0, %s76
      %s79 = sphi 0, %s78
      %s93 = sphi 0, %s79
      %s97 = sphi 0, %s97
      %s99 = sphi 0, %s97
      %s100 = sphi 0, %s99
      %s114 = sphi 0, %s100
      %s118 = sphi 0, %s118
      %s120 = sphi 0, %s118
      %s121 = sphi 0, %s120
      %s135 = sphi 0, %s121
      %s139 = sphi 0, %s139
      %s141 = sphi 0, %s139
      %s142 = sphi 0, %s141
      %s156 = sphi 0, %s142
      %s160 = sphi 0, %s160
      %s162 = sphi 0, %s160
      %s163 = sphi 0, %s162
      %s177 = sphi 0, %s163
      %s181 = sphi 0, %s181
      %s183 = sphi 0, %s181
      %s184 = sphi 0, %s183
      %s198 = sphi 0, %s184
      %s202 = sphi 0, %s202
      %s204 = sphi 0, %s202
      %s205 = sphi 0, %s204
      %s219 = sphi 0, %s205
      %s225 = sphi 0, %s227
      %s228 = sphi 0, %s225
      %s229 = sphi 0, %s228
      %s245 = sphi 0, %s229
    $region4: #{tpu_custom_call.1} parent=1 // loop_header_branch
      %24 = sbr.rel (%p22) target = $region8
    $region5: #{tpu_custom_call.1} parent=1 // loop_body
      %s26 = ssub.s32 %s21, 1
      %s27 = ssub.s32 %s21, 2
      %s28 = sadd.s32 %s21, 1
      %s29 = ssub.s32 %s21, %s28
      %p30 = scmp.eq.s32.totalorder %s29, 0
      %s32 = sadd.s32 %s31, 1
      %s33 = scalar_select %p30, %s31, %s32
      %p36 = pneg %p30
      %p37 = scmp.eq.s32.totalorder %s21, 1
      %p38 = por %p36, %p37
      %p39 = scmp.ne.s32.totalorder %s31, %s34
      %p40 = scmp.eq.s32.totalorder %s21, 0
      %p41 = por %p39, %p40
      %p42 = scmp.ne.s32.totalorder %s31, %s34
      %p43 = scmp.eq.s32.totalorder %s26, 1
      %p44 = por %p42, %p43
      %p45 = scmp.ne.s32.totalorder %s34, %s35
      %p46 = scmp.eq.s32.totalorder %s26, 0
      %p47 = por %p45, %p46
      %p48 = scmp.ne.s32.totalorder %s34, %s35
      %p49 = scmp.eq.s32.totalorder %s27, 1
      %p50 = por %p48, %p49
      %p52 = scmp.ne.s32.totalorder %s35, %s51
      %p53 = scmp.eq.s32.totalorder %s27, 0
      %p54 = por %p52, %p53
      %s56 = sadd.s32 %s55, 1
      %p59 = scmp.eq.s32.totalorder %s21, 1
      %p60 = scmp.ne.s32.totalorder %s55, %s57
      %p61 = scmp.eq.s32.totalorder %s21, 0
      %p62 = por %p60, %p61
      %p63 = scmp.ne.s32.totalorder %s55, %s57
      %p64 = scmp.eq.s32.totalorder %s26, 1
      %p65 = por %p63, %p64
      %p66 = scmp.ne.s32.totalorder %s57, %s58
      %p67 = scmp.eq.s32.totalorder %s26, 0
      %p68 = por %p66, %p67
      %p69 = scmp.ne.s32.totalorder %s57, %s58
      %p70 = scmp.eq.s32.totalorder %s27, 1
      %p71 = por %p69, %p70
      %p73 = scmp.ne.s32.totalorder %s58, %s72
      %p74 = scmp.eq.s32.totalorder %s27, 0
      %p75 = por %p73, %p74
      %s77 = sadd.s32 %s76, 1
      %p80 = scmp.eq.s32.totalorder %s21, 1
      %p81 = scmp.ne.s32.totalorder %s76, %s78
      %p82 = scmp.eq.s32.totalorder %s21, 0
      %p83 = por %p81, %p82
      %p84 = scmp.ne.s32.totalorder %s76, %s78
      %p85 = scmp.eq.s32.totalorder %s26, 1
      %p86 = por %p84, %p85
      %p87 = scmp.ne.s32.totalorder %s78, %s79
      %p88 = scmp.eq.s32.totalorder %s26, 0
      %p89 = por %p87, %p88
      %p90 = scmp.ne.s32.totalorder %s78, %s79
      %p91 = scmp.eq.s32.totalorder %s27, 1
      %p92 = por %p90, %p91
      %p94 = scmp.ne.s32.totalorder %s79, %s93
      %p95 = scmp.eq.s32.totalorder %s27, 0
      %p96 = por %p94, %p95
      %s98 = sadd.s32 %s97, 1
      %p101 = scmp.eq.s32.totalorder %s21, 1
      %p102 = scmp.ne.s32.totalorder %s97, %s99
      %p103 = scmp.eq.s32.totalorder %s21, 0
      %p104 = por %p102, %p103
      %p105 = scmp.ne.s32.totalorder %s97, %s99
      %p106 = scmp.eq.s32.totalorder %s26, 1
      %p107 = por %p105, %p106
      %p108 = scmp.ne.s32.totalorder %s99, %s100
      %p109 = scmp.eq.s32.totalorder %s26, 0
      %p110 = por %p108, %p109
      %p111 = scmp.ne.s32.totalorder %s99, %s100
      %p112 = scmp.eq.s32.totalorder %s27, 1
      %p113 = por %p111, %p112
      %p115 = scmp.ne.s32.totalorder %s100, %s114
      %p116 = scmp.eq.s32.totalorder %s27, 0
      %p117 = por %p115, %p116
      %s119 = sadd.s32 %s118, 1
      %p122 = scmp.eq.s32.totalorder %s21, 1
      %p123 = scmp.ne.s32.totalorder %s118, %s120
      %p124 = scmp.eq.s32.totalorder %s21, 0
      %p125 = por %p123, %p124
      %p126 = scmp.ne.s32.totalorder %s118, %s120
      %p127 = scmp.eq.s32.totalorder %s26, 1
      %p128 = por %p126, %p127
      %p129 = scmp.ne.s32.totalorder %s120, %s121
      %p130 = scmp.eq.s32.totalorder %s26, 0
      %p131 = por %p129, %p130
      %p132 = scmp.ne.s32.totalorder %s120, %s121
      %p133 = scmp.eq.s32.totalorder %s27, 1
      %p134 = por %p132, %p133
      %p136 = scmp.ne.s32.totalorder %s121, %s135
      %p137 = scmp.eq.s32.totalorder %s27, 0
      %p138 = por %p136, %p137
      %s140 = sadd.s32 %s139, 1
      %p143 = scmp.eq.s32.totalorder %s21, 1
      %p144 = scmp.ne.s32.totalorder %s139, %s141
      %p145 = scmp.eq.s32.totalorder %s21, 0
      %p146 = por %p144, %p145
      %p147 = scmp.ne.s32.totalorder %s139, %s141
      %p148 = scmp.eq.s32.totalorder %s26, 1
      %p149 = por %p147, %p148
      %p150 = scmp.ne.s32.totalorder %s141, %s142
      %p151 = scmp.eq.s32.totalorder %s26, 0
      %p152 = por %p150, %p151
      %p153 = scmp.ne.s32.totalorder %s141, %s142
      %p154 = scmp.eq.s32.totalorder %s27, 1
      %p155 = por %p153, %p154
      %p157 = scmp.ne.s32.totalorder %s142, %s156
      %p158 = scmp.eq.s32.totalorder %s27, 0
      %p159 = por %p157, %p158
      %s161 = sadd.s32 %s160, 1
      %p164 = scmp.eq.s32.totalorder %s21, 1
      %p165 = scmp.ne.s32.totalorder %s160, %s162
      %p166 = scmp.eq.s32.totalorder %s21, 0
      %p167 = por %p165, %p166
      %p168 = scmp.ne.s32.totalorder %s160, %s162
      %p169 = scmp.eq.s32.totalorder %s26, 1
      %p170 = por %p168, %p169
      %p171 = scmp.ne.s32.totalorder %s162, %s163
      %p172 = scmp.eq.s32.totalorder %s26, 0
      %p173 = por %p171, %p172
      %p174 = scmp.ne.s32.totalorder %s162, %s163
      %p175 = scmp.eq.s32.totalorder %s27, 1
      %p176 = por %p174, %p175
      %p178 = scmp.ne.s32.totalorder %s163, %s177
      %p179 = scmp.eq.s32.totalorder %s27, 0
      %p180 = por %p178, %p179
      %s182 = sadd.s32 %s181, 1
      %p185 = scmp.eq.s32.totalorder %s21, 1
      %p186 = scmp.ne.s32.totalorder %s181, %s183
      %p187 = scmp.eq.s32.totalorder %s21, 0
      %p188 = por %p186, %p187
      %p189 = scmp.ne.s32.totalorder %s181, %s183
      %p190 = scmp.eq.s32.totalorder %s26, 1
      %p191 = por %p189, %p190
      %p192 = scmp.ne.s32.totalorder %s183, %s184
      %p193 = scmp.eq.s32.totalorder %s26, 0
      %p194 = por %p192, %p193
      %p195 = scmp.ne.s32.totalorder %s183, %s184
      %p196 = scmp.eq.s32.totalorder %s27, 1
      %p197 = por %p195, %p196
      %p199 = scmp.ne.s32.totalorder %s184, %s198
      %p200 = scmp.eq.s32.totalorder %s27, 0
      %p201 = por %p199, %p200
      %s203 = sadd.s32 %s202, 1
      %p206 = scmp.eq.s32.totalorder %s21, 1
      %p207 = scmp.ne.s32.totalorder %s202, %s204
      %p208 = scmp.eq.s32.totalorder %s21, 0
      %p209 = por %p207, %p208
      %p210 = scmp.ne.s32.totalorder %s202, %s204
      %p211 = scmp.eq.s32.totalorder %s26, 1
      %p212 = por %p210, %p211
      %p213 = scmp.ne.s32.totalorder %s204, %s205
      %p214 = scmp.eq.s32.totalorder %s26, 0
      %p215 = por %p213, %p214
      %p216 = scmp.ne.s32.totalorder %s204, %s205
      %p217 = scmp.eq.s32.totalorder %s27, 1
      %p218 = por %p216, %p217
      %p220 = scmp.ne.s32.totalorder %s205, %s219
      %p221 = scmp.eq.s32.totalorder %s27, 0
      %p222 = por %p220, %p221
      %s223 = ssub.s32 %s21, %s28
      %p224 = scmp.eq.s32.totalorder %s223, 0
      %s226 = sadd.s32 %s225, 1
      %s227 = scalar_select %p224, %s225, %s226
      %p230 = pneg %p224
      %p231 = scmp.eq.s32.totalorder %s21, 1
      %p232 = por %p230, %p231
      %p233 = scmp.ne.s32.totalorder %s225, %s228
      %p234 = scmp.eq.s32.totalorder %s21, 0
      %p235 = por %p233, %p234
      %p236 = scmp.ne.s32.totalorder %s225, %s228
      %p237 = scmp.eq.s32.totalorder %s26, 1
      %p238 = por %p236, %p237
      %p239 = scmp.ne.s32.totalorder %s228, %s229
      %p240 = scmp.eq.s32.totalorder %s26, 0
      %p241 = por %p239, %p240
      %p242 = scmp.ne.s32.totalorder %s228, %s229
      %p243 = scmp.eq.s32.totalorder %s27, 1
      %p244 = por %p242, %p243
      %p246 = scmp.ne.s32.totalorder %s229, %s245
      %p247 = scmp.eq.s32.totalorder %s27, 0
      %p248 = por %p246, %p247
      %p249 = scmp.le.s32.totalorder 1, %s21
      %p250 = scmp.lt.s32.totalorder %s21, 3
      %p251 = pnand %p249, %p250
      %p252 = pneg %p251
      // Predicated region
      $region9: #{tpu_custom_call.1} parent=5 // pred_check
        _
      $region10: #{tpu_custom_call.1} parent=5 // pred_check_branch
        %254 = sbr.rel (%p251) target = $region12
      $region11: #{tpu_custom_call.1} parent=5 // pred_region
        %s255 = ssub.s32 %s21, 1
        // Predicated region
        $region13: #{tpu_custom_call.1} parent=11 // pred_check
          %p256 = pneg %p68
        $region14: #{tpu_custom_call.1} parent=11 // pred_check_branch
          %258 = sbr.rel (%p256) target = $region16
        $region15: #{tpu_custom_call.1} parent=11 // pred_region
          %s260 = ssub.s32 4608, 4608
          %261 = vsyncadd [#allocation5], %s260
          %s262 = sshll.u32 [#allocation4], 4
          %s263 = int_to_ptr.vmem [resolvable:$true] %s262
          %268 = dma.hbm_to_vmem [thread:$0]  %s1, 4608, %s263, [#allocation5], 1152, 1152, 72
        $region16: #{tpu_custom_call.1} parent=11 // pred_fallthru
          _
        // Predicated region
        $region17: #{tpu_custom_call.1} parent=11 // pred_check
          %p269 = pneg %p89
        $region18: #{tpu_custom_call.1} parent=11 // pred_check_branch
          %271 = sbr.rel (%p269) target = $region20
        $region19: #{tpu_custom_call.1} parent=11 // pred_region
          %s273 = ssub.s32 144, 144
          %274 = vsyncadd [#allocation5], %s273
          %s276 = sshll.u32 [#allocation6], 4
          %s277 = int_to_ptr.vmem [resolvable:$true] %s276
          %279 = dma.hbm_to_vmem [thread:$0]  %s2, 144, %s277, [#allocation5]
        $region20: #{tpu_custom_call.1} parent=11 // pred_fallthru
          _
        // Predicated region
        $region21: #{tpu_custom_call.1} parent=11 // pred_check
          %p280 = pneg %p110
        $region22: #{tpu_custom_call.1} parent=11 // pred_check_branch
          %282 = sbr.rel (%p280) target = $region24
        $region23: #{tpu_custom_call.1} parent=11 // pred_region
          %s284 = ssub.s32 49152, 49152
          %285 = vsyncadd [#allocation8], %s284
          %s286 = sshll.u32 [#allocation7], 4
          %s287 = int_to_ptr.vmem [resolvable:$true] %s286
          %292 = dma.hbm_to_vmem [thread:$0]  %s3, 49152, %s287, [#allocation8], 1024, 1024, 64
        $region24: #{tpu_custom_call.1} parent=11 // pred_fallthru
          _
        // Predicated region
        $region25: #{tpu_custom_call.1} parent=11 // pred_check
          %p293 = pneg %p131
        $region26: #{tpu_custom_call.1} parent=11 // pred_check_branch
          %295 = sbr.rel (%p293) target = $region28
        $region27: #{tpu_custom_call.1} parent=11 // pred_region
          %s297 = ssub.s32 128, 128
          %298 = vsyncadd [#allocation8], %s297
          %s300 = sshll.u32 [#allocation9], 4
          %s301 = int_to_ptr.vmem [resolvable:$true] %s300
          %303 = dma.hbm_to_vmem [thread:$0]  %s4, 128, %s301, [#allocation8]
        $region28: #{tpu_custom_call.1} parent=11 // pred_fallthru
          _
        // Predicated region
        $region29: #{tpu_custom_call.1} parent=11 // pred_check
          %p304 = pneg %p152
        $region30: #{tpu_custom_call.1} parent=11 // pred_check_branch
          %306 = sbr.rel (%p304) target = $region32
        $region31: #{tpu_custom_call.1} parent=11 // pred_region
          _
        $region32: #{tpu_custom_call.1} parent=11 // pred_fallthru
          _
        // Predicated region
        $region33: #{tpu_custom_call.1} parent=11 // pred_check
          %p307 = pneg %p173
        $region34: #{tpu_custom_call.1} parent=11 // pred_check_branch
          %309 = sbr.rel (%p307) target = $region36
        $region35: #{tpu_custom_call.1} parent=11 // pred_region
          %s311 = ssub.s32 16, 16
          %312 = vsyncadd [#allocation11], %s311
          %s314 = sshll.u32 [#allocation10], 4
          %s315 = int_to_ptr.vmem [resolvable:$true] %s314
          %317 = dma.hbm_to_vmem [thread:$0]  %s6, 16, %s315, [#allocation11]
        $region36: #{tpu_custom_call.1} parent=11 // pred_fallthru
          _
        // Predicated region
        $region37: #{tpu_custom_call.1} parent=11 // pred_check
          %p318 = pneg %p194
        $region38: #{tpu_custom_call.1} parent=11 // pred_check_branch
          %320 = sbr.rel (%p318) target = $region40
        $region39: #{tpu_custom_call.1} parent=11 // pred_region
          _
        $region40: #{tpu_custom_call.1} parent=11 // pred_fallthru
          _
        // Predicated region
        $region41: #{tpu_custom_call.1} parent=11 // pred_check
          %p321 = pneg %p215
        $region42: #{tpu_custom_call.1} parent=11 // pred_check_branch
          %323 = sbr.rel (%p321) target = $region44
        $region43: #{tpu_custom_call.1} parent=11 // pred_region
          %s325 = ssub.s32 16, 16
          %326 = vsyncadd [#allocation11], %s325
          %s328 = sshll.u32 [#allocation12], 4
          %s329 = int_to_ptr.vmem [resolvable:$true] %s328
          %331 = dma.hbm_to_vmem [thread:$0]  %s8, 16, %s329, [#allocation11]
        $region44: #{tpu_custom_call.1} parent=11 // pred_fallthru
          _
      $region12: #{tpu_custom_call.1} parent=5 // pred_fallthru
        _
      %p332 = scmp.lt.s32.totalorder %s21, 2
      // Predicated region
      $region45: #{tpu_custom_call.1} parent=5 // pred_check
        %p333 = pneg %p332
      $region46: #{tpu_custom_call.1} parent=5 // pred_check_branch
        %335 = sbr.rel (%p333) target = $region48
      $region47: #{tpu_custom_call.1} parent=5 // pred_region
        // Predicated region
        $region49: #{tpu_custom_call.1} parent=47 // pred_check
          %p336 = pneg %p41
        $region50: #{tpu_custom_call.1} parent=47 // pred_check_branch
          %338 = sbr.rel (%p336) target = $region52
        $region51: #{tpu_custom_call.1} parent=47 // pred_region
          %s339 = sand.u32 %s31, 1
          %s340 = scalar_lea.sflag [#allocation3], %s339
          %s341 = sand.u32 %s31, 1
          %s342 = smul.addr %s341, 8
          %s343 = scalar_lea.vmem [#allocation2], %s342
          %s345 = ssub.s32 128, 128
          %346 = vsyncadd %s340, %s345
          %s347 = smul.addr %s21, 128
          %s348 = scalar_lea.hbm %s0, %s347
          %s350 = sshll.u32 %s343, 4
          %s351 = int_to_ptr.vmem [resolvable:$true] %s350
          %353 = dma.hbm_to_vmem [thread:$0]  %s348, 128, %s351, %s340
        $region52: #{tpu_custom_call.1} parent=47 // pred_fallthru
          _
      $region48: #{tpu_custom_call.1} parent=5 // pred_fallthru
        _
      %p354 = scmp.le.s32.totalorder 1, %s21
      %p355 = scmp.lt.s32.totalorder %s21, 3
      %p356 = pnand %p354, %p355
      %p357 = pneg %p356
      // Predicated region
      $region53: #{tpu_custom_call.1} parent=5 // pred_check
        _
      $region54: #{tpu_custom_call.1} parent=5 // pred_check_branch
        %359 = sbr.rel (%p356) target = $region56
      $region55: #{tpu_custom_call.1} parent=5 // pred_region
        %s360 = ssub.s32 %s21, 1
        %s361 = sand.u32 %s34, 1
        %s362 = scalar_lea.sflag [#allocation3], %s361
        %s363 = sand.u32 %s34, 1
        %s364 = smul.addr %s363, 8
        %s365 = scalar_lea.vmem [#allocation2], %s364
        // Predicated region
        $region57: #{tpu_custom_call.1} parent=55 // pred_check
          %p366 = pneg %p47
        $region58: #{tpu_custom_call.1} parent=55 // pred_check_branch
          %368 = sbr.rel (%p366) target = $region60
        $region59: #{tpu_custom_call.1} parent=55 // pred_region
          %369 = dma.done %s362, 128
        $region60: #{tpu_custom_call.1} parent=55 // pred_fallthru
          _
        // Predicated region
        $region61: #{tpu_custom_call.1} parent=55 // pred_check
          %p370 = pneg %p68
        $region62: #{tpu_custom_call.1} parent=55 // pred_check_branch
          %372 = sbr.rel (%p370) target = $region64
        $region63: #{tpu_custom_call.1} parent=55 // pred_region
          %373 = dma.done [#allocation5], 4608
        $region64: #{tpu_custom_call.1} parent=55 // pred_fallthru
          _
        // Predicated region
        $region65: #{tpu_custom_call.1} parent=55 // pred_check
          %p374 = pneg %p89
        $region66: #{tpu_custom_call.1} parent=55 // pred_check_branch
          %376 = sbr.rel (%p374) target = $region68
        $region67: #{tpu_custom_call.1} parent=55 // pred_region
          %377 = dma.done [#allocation5], 144
        $region68: #{tpu_custom_call.1} parent=55 // pred_fallthru
          _
        // Predicated region
        $region69: #{tpu_custom_call.1} parent=55 // pred_check
          %p378 = pneg %p110
        $region70: #{tpu_custom_call.1} parent=55 // pred_check_branch
          %380 = sbr.rel (%p378) target = $region72
        $region71: #{tpu_custom_call.1} parent=55 // pred_region
          %381 = dma.done [#allocation8], 49152
        $region72: #{tpu_custom_call.1} parent=55 // pred_fallthru
          _
        // Predicated region
        $region73: #{tpu_custom_call.1} parent=55 // pred_check
          %p382 = pneg %p131
        $region74: #{tpu_custom_call.1} parent=55 // pred_check_branch
          %384 = sbr.rel (%p382) target = $region76
        $region75: #{tpu_custom_call.1} parent=55 // pred_region
          %385 = dma.done [#allocation8], 128
        $region76: #{tpu_custom_call.1} parent=55 // pred_fallthru
          _
        // Predicated region
        $region77: #{tpu_custom_call.1} parent=55 // pred_check
          %p386 = pneg %p173
        $region78: #{tpu_custom_call.1} parent=55 // pred_check_branch
          %388 = sbr.rel (%p386) target = $region80
        $region79: #{tpu_custom_call.1} parent=55 // pred_region
          %389 = dma.done [#allocation11], 16
        $region80: #{tpu_custom_call.1} parent=55 // pred_fallthru
          _
        // Predicated region
        $region81: #{tpu_custom_call.1} parent=55 // pred_check
          %p390 = pneg %p215
        $region82: #{tpu_custom_call.1} parent=55 // pred_check_branch
          %392 = sbr.rel (%p390) target = $region84
        $region83: #{tpu_custom_call.1} parent=55 // pred_region
          %393 = dma.done [#allocation11], 16
        $region84: #{tpu_custom_call.1} parent=55 // pred_fallthru
          _
        %s394 = sand.u32 %s34, 1
        %s395 = scalar_lea.sflag [#allocation3], %s394
        %s396 = sand.u32 %s34, 1
        %s397 = smul.addr %s396, 8
        %s398 = scalar_lea.vmem [#allocation2], %s397
        %p399 = pneg %p47
        %p400 = pneg %p44
        %p401 = pneg %p68
        %p402 = pneg %p65
        %p403 = pneg %p89
        %p404 = pneg %p86
        %p405 = pneg %p110
        %p406 = pneg %p107
        %p407 = pneg %p131
        %p408 = pneg %p128
        %p409 = pneg %p152
        %p410 = pneg %p149
        %p411 = pneg %p173
        %p412 = pneg %p170
        %p413 = pneg %p194
        %p414 = pneg %p191
        %p415 = pneg %p215
        %p416 = pneg %p212
        %p417 = pneg %p241
        %p418 = pneg %p238
        %p419 = scmp.lt.s32.totalorder %s26, 1
        %s420 = scalar_select %p419, %s26, 1
        %s421 = smul.addr %s420, 8
        %s422 = scalar_lea.vmem %s9, %s421
        %p423 = scmp.lt.s32.totalorder %s26, 1
        %s424 = scalar_select %p423, %s26, 1
        %s425 = smul.addr %s424, 8
        %s426 = scalar_lea.vmem %s9, %s425
        %v427 = vld [vmem:[%s365] sm:$0xff]
        %v428 = vld [vmem:[#allocation4] sm:$0xff]
        %v429 = vld [vmem:[#allocation4 + $0x8] sm:$0xff]
        %v430 = vld [vmem:[#allocation4 + $0x10] sm:$0xff]
        %v431 = vld [vmem:[#allocation4 + $0x18] sm:$0xff]
        %v432 = vld [vmem:[#allocation4 + $0x20] sm:$0xff]
        %v433 = vld [vmem:[#allocation4 + $0x28] sm:$0xff]
        %v434 = vld [vmem:[#allocation4 + $0x30] sm:$0xff]
        %v435 = vld [vmem:[#allocation4 + $0x38] sm:$0xff]
        %v436 = vld [vmem:[#allocation4 + $0x40] sm:$0xff]
        %v437 = vld [vmem:[#allocation4 + $0x48] sm:$0xff]
        %v438 = vld [vmem:[#allocation4 + $0x50] sm:$0xff]
        %v439 = vld [vmem:[#allocation4 + $0x58] sm:$0xff]
        %v440 = vld [vmem:[#allocation4 + $0x60] sm:$0xff]
        %v441 = vld [vmem:[#allocation4 + $0x68] sm:$0xff]
        %v442 = vld [vmem:[#allocation4 + $0x70] sm:$0xff]
        %v443 = vld [vmem:[#allocation4 + $0x78] sm:$0xff]
        %v444 = vld [vmem:[#allocation4 + $0x80] sm:$0xff]
        %v445 = vld [vmem:[#allocation4 + $0x88] sm:$0xff]
        %v446 = vld [vmem:[#allocation4 + $0x90] sm:$0xff]
        %v447 = vld [vmem:[#allocation4 + $0x98] sm:$0xff]
        %v448 = vld [vmem:[#allocation4 + $0xa0] sm:$0xff]
        %v449 = vld [vmem:[#allocation4 + $0xa8] sm:$0xff]
        %v450 = vld [vmem:[#allocation4 + $0xb0] sm:$0xff]
        %v451 = vld [vmem:[#allocation4 + $0xb8] sm:$0xff]
        %v452 = vld [vmem:[#allocation4 + $0xc0] sm:$0xff]
        %v453 = vld [vmem:[#allocation4 + $0xc8] sm:$0xff]
        %v454 = vld [vmem:[#allocation4 + $0xd0] sm:$0xff]
        %v455 = vld [vmem:[#allocation4 + $0xd8] sm:$0xff]
        %v456 = vld [vmem:[#allocation4 + $0xe0] sm:$0xff]
        %v457 = vld [vmem:[#allocation4 + $0xe8] sm:$0xff]
        %v458 = vld [vmem:[#allocation4 + $0xf0] sm:$0xff]
        %v459 = vld [vmem:[#allocation4 + $0xf8] sm:$0xff]
        %v460 = vld [vmem:[#allocation4 + $0x100] sm:$0xff]
        %v461 = vld [vmem:[#allocation4 + $0x108] sm:$0xff]
        %v462 = vld [vmem:[#allocation4 + $0x110] sm:$0xff]
        %v463 = vld [vmem:[#allocation4 + $0x118] sm:$0xff]
        %v464 = vld [vmem:[#allocation6] sm:$0xff]
        %v465 = vld [vmem:[#allocation6 + $0x8] sm:$0x1]
        %v468 = vlaneseq
        %v469 = vshrl.u32 %v468, 7
        %v470 = vsub.s32 0, %v469
        %v471 = vrot.slane %v464, %v470
        %v472 = vlaneseq
        %v473 = vshrl.u32 %v472, 7
        %v474 = vsub.s32 1, %v473
        %v475 = vrot.slane %v464, %v474
        %v476 = vlaneseq
        %v477 = vshrl.u32 %v476, 7
        %v478 = vsub.s32 2, %v477
        %v479 = vrot.slane %v464, %v478
        %v480 = vlaneseq
        %v481 = vshrl.u32 %v480, 7
        %v482 = vsub.s32 3, %v481
        %v483 = vrot.slane %v464, %v482
        %v484 = vlaneseq
        %v485 = vshrl.u32 %v484, 7
        %v486 = vsub.s32 4, %v485
        %v487 = vrot.slane %v464, %v486
        %v488 = vlaneseq
        %v489 = vshrl.u32 %v488, 7
        %v490 = vsub.s32 5, %v489
        %v491 = vrot.slane %v464, %v490
        %v492 = vlaneseq
        %v493 = vshrl.u32 %v492, 7
        %v494 = vsub.s32 6, %v493
        %v495 = vrot.slane %v464, %v494
        %v496 = vlaneseq
        %v497 = vshrl.u32 %v496, 7
        %v498 = vsub.s32 7, %v497
        %v499 = vrot.slane %v464, %v498
        %v500 = vlaneseq
        %v501 = vshrl.u32 %v500, 7
        %v502 = vsub.s32 0, %v501
        %v503 = vrot.slane %v465, %v502
        %vm513 = vcmask 261120
        %v515 = vsel %vm513, %v427, 0
        %517 = vmatprep.subr.mxu0 %v429
        %518 = vmatpush1.msra.mxu0 %v428
        %519 = vmatprep.subr.mxu0 %v438
        %520 = vmatpush1.msra.mxu0 %v437
        %521 = vmatprep.subr.mxu0 %v447
        %522 = vmatpush1.msra.mxu0 %v446
        %523 = vmatprep.subr.mxu0 %v456
        %524 = vmatpush1.msra.mxu0 %v455
        %525 = vmatprep.subr.mxu0 0.0
        %526 = vmatpush1.msra.mxu0 0.0
        %527 = vmatprep.subr.mxu0 0.0
        %528 = vmatpush1.msra.mxu0 0.0
        %529 = vmatprep.subr.mxu0 0.0
        %530 = vmatpush1.msra.mxu0 0.0
        %531 = vmatprep.subr.mxu0 0.0
        %532 = vmatpush1.msra.mxu0 0.0
        %533 = vmatprep.subr.mxu0 0.0
        %534 = vmatpush1.msra.mxu0 0.0
        %535 = vmatprep.subr.mxu0 0.0
        %536 = vmatpush1.msra.mxu0 0.0
        %537 = vmatprep.subr.mxu0 0.0
        %538 = vmatpush1.msra.mxu0 0.0
        %539 = vmatprep.subr.mxu0 0.0
        %540 = vmatpush1.msra.mxu0 0.0
        %541 = vmatprep.subr.mxu0 0.0
        %542 = vmatpush1.msra.mxu0 0.0
        %543 = vmatprep.subr.mxu0 0.0
        %544 = vmatpush1.msra.mxu0 0.0
        %545 = vmatprep.subr.mxu0 0.0
        %546 = vmatpush1.msra.mxu0 0.0
        %547 = vmatprep.subr.mxu0 0.0
        %548 = vmatpush1.msra.mxu0 0.0
        %549 = vmatprep.subr.mxu0 0.0
        %550 = vmatpush1.msra.mxu0 0.0
        %551 = vmatprep.subr.mxu0 0.0
        %552 = vmatpush1.msra.mxu0 0.0
        %553 = vmatprep.subr.mxu0 0.0
        %554 = vmatpush1.msra.mxu0 0.0
        %555 = vmatprep.subr.mxu0 0.0
        %556 = vmatpush1.msra.mxu0 0.0
        %557 = vmatprep.subr.mxu0 0.0
        %558 = vmatpush1.msra.mxu0 0.0
        %559 = vmatprep.subr.mxu0 0.0
        %560 = vmatpush1.msra.mxu0 0.0
        %561 = vmatprep.subr.mxu0 0.0
        %562 = vmatpush1.msra.mxu0 0.0
        %563 = vmatprep.subr.mxu0 0.0
        %564 = vmatpush1.msra.mxu0 0.0
        %565 = vmatprep.subr.mxu0 0.0
        %566 = vmatpush1.msra.mxu0 0.0
        %567 = vmatprep.subr.mxu0 0.0
        %568 = vmatpush1.msra.mxu0 0.0
        %569 = vmatprep.subr.mxu0 0.0
        %570 = vmatpush1.msra.mxu0 0.0
        %571 = vmatprep.subr.mxu0 0.0
        %572 = vmatpush1.msra.mxu0 0.0
        %573 = vmatprep.subr.mxu0 0.0
        %574 = vmatpush1.msra.mxu0 0.0
        %575 = vmatprep.subr.mxu0 0.0
        %576 = vmatpush1.msra.mxu0 0.0
        %577 = vmatprep.subr.mxu0 0.0
        %578 = vmatpush1.msra.mxu0 0.0
        %579 = vmatprep.subr.mxu0 0.0
        %580 = vmatpush1.msra.mxu0 0.0
        %581 = vmatprep.mubr.f32.mxu0 0.0
        %582 = vmatmul.mubr.f32.gmra.mrb[0].mxu0 %v515
        %v583 = vpop.f32.mrb[0].mxu0
        %v584 = vadd.f32 %v471, %v583
        %v585 = vpop.f32.mrb[0].mxu0
        %v586 = vadd.f32 %v475, %v585
        %587 = vdwg.mxu0
        %588 = vmatprep.subr.mxu0 %v431
        %589 = vmatpush1.msra.mxu0 %v430
        %590 = vmatprep.subr.mxu0 %v440
        %591 = vmatpush1.msra.mxu0 %v439
        %592 = vmatprep.subr.mxu0 %v449
        %593 = vmatpush1.msra.mxu0 %v448
        %594 = vmatprep.subr.mxu0 %v458
        %595 = vmatpush1.msra.mxu0 %v457
        %596 = vmatprep.subr.mxu0 0.0
        %597 = vmatpush1.msra.mxu0 0.0
        %598 = vmatprep.subr.mxu0 0.0
        %599 = vmatpush1.msra.mxu0 0.0
        %600 = vmatprep.subr.mxu0 0.0
        %601 = vmatpush1.msra.mxu0 0.0
        %602 = vmatprep.subr.mxu0 0.0
        %603 = vmatpush1.msra.mxu0 0.0
        %604 = vmatprep.subr.mxu0 0.0
        %605 = vmatpush1.msra.mxu0 0.0
        %606 = vmatprep.subr.mxu0 0.0
        %607 = vmatpush1.msra.mxu0 0.0
        %608 = vmatprep.subr.mxu0 0.0
        %609 = vmatpush1.msra.mxu0 0.0
        %610 = vmatprep.subr.mxu0 0.0
        %611 = vmatpush1.msra.mxu0 0.0
        %612 = vmatprep.subr.mxu0 0.0
        %613 = vmatpush1.msra.mxu0 0.0
        %614 = vmatprep.subr.mxu0 0.0
        %615 = vmatpush1.msra.mxu0 0.0
        %616 = vmatprep.subr.mxu0 0.0
        %617 = vmatpush1.msra.mxu0 0.0
        %618 = vmatprep.subr.mxu0 0.0
        %619 = vmatpush1.msra.mxu0 0.0
        %620 = vmatprep.subr.mxu0 0.0
        %621 = vmatpush1.msra.mxu0 0.0
        %622 = vmatprep.subr.mxu0 0.0
        %623 = vmatpush1.msra.mxu0 0.0
        %624 = vmatprep.subr.mxu0 0.0
        %625 = vmatpush1.msra.mxu0 0.0
        %626 = vmatprep.subr.mxu0 0.0
        %627 = vmatpush1.msra.mxu0 0.0
        %628 = vmatprep.subr.mxu0 0.0
        %629 = vmatpush1.msra.mxu0 0.0
        %630 = vmatprep.subr.mxu0 0.0
        %631 = vmatpush1.msra.mxu0 0.0
        %632 = vmatprep.subr.mxu0 0.0
        %633 = vmatpush1.msra.mxu0 0.0
        %634 = vmatprep.subr.mxu0 0.0
        %635 = vmatpush1.msra.mxu0 0.0
        %636 = vmatprep.subr.mxu0 0.0
        %637 = vmatpush1.msra.mxu0 0.0
        %638 = vmatprep.subr.mxu0 0.0
        %639 = vmatpush1.msra.mxu0 0.0
        %640 = vmatprep.subr.mxu0 0.0
        %641 = vmatpush1.msra.mxu0 0.0
        %642 = vmatprep.subr.mxu0 0.0
        %643 = vmatpush1.msra.mxu0 0.0
        %644 = vmatprep.subr.mxu0 0.0
        %645 = vmatpush1.msra.mxu0 0.0
        %646 = vmatprep.subr.mxu0 0.0
        %647 = vmatpush1.msra.mxu0 0.0
        %648 = vmatprep.subr.mxu0 0.0
        %649 = vmatpush1.msra.mxu0 0.0
        %650 = vmatprep.subr.mxu0 0.0
        %651 = vmatpush1.msra.mxu0 0.0
        %652 = vmatprep.mubr.f32.mxu0 0.0
        %653 = vmatmul.mubr.f32.gmra.mrb[0].mxu0 %v515
        %v654 = vpop.f32.mrb[0].mxu0
        %v655 = vadd.f32 %v479, %v654
        %v656 = vpop.f32.mrb[0].mxu0
        %v657 = vadd.f32 %v483, %v656
        %658 = vdwg.mxu0
        %659 = vmatprep.subr.mxu0 %v433
        %660 = vmatpush1.msra.mxu0 %v432
        %661 = vmatprep.subr.mxu0 %v442
        %662 = vmatpush1.msra.mxu0 %v441
        %663 = vmatprep.subr.mxu0 %v451
        %664 = vmatpush1.msra.mxu0 %v450
        %665 = vmatprep.subr.mxu0 %v460
        %666 = vmatpush1.msra.mxu0 %v459
        %667 = vmatprep.subr.mxu0 0.0
        %668 = vmatpush1.msra.mxu0 0.0
        %669 = vmatprep.subr.mxu0 0.0
        %670 = vmatpush1.msra.mxu0 0.0
        %671 = vmatprep.subr.mxu0 0.0
        %672 = vmatpush1.msra.mxu0 0.0
        %673 = vmatprep.subr.mxu0 0.0
        %674 = vmatpush1.msra.mxu0 0.0
        %675 = vmatprep.subr.mxu0 0.0
        %676 = vmatpush1.msra.mxu0 0.0
        %677 = vmatprep.subr.mxu0 0.0
        %678 = vmatpush1.msra.mxu0 0.0
        %679 = vmatprep.subr.mxu0 0.0
        %680 = vmatpush1.msra.mxu0 0.0
        %681 = vmatprep.subr.mxu0 0.0
        %682 = vmatpush1.msra.mxu0 0.0
        %683 = vmatprep.subr.mxu0 0.0
        %684 = vmatpush1.msra.mxu0 0.0
        %685 = vmatprep.subr.mxu0 0.0
        %686 = vmatpush1.msra.mxu0 0.0
        %687 = vmatprep.subr.mxu0 0.0
        %688 = vmatpush1.msra.mxu0 0.0
        %689 = vmatprep.subr.mxu0 0.0
        %690 = vmatpush1.msra.mxu0 0.0
        %691 = vmatprep.subr.mxu0 0.0
        %692 = vmatpush1.msra.mxu0 0.0
        %693 = vmatprep.subr.mxu0 0.0
        %694 = vmatpush1.msra.mxu0 0.0
        %695 = vmatprep.subr.mxu0 0.0
        %696 = vmatpush1.msra.mxu0 0.0
        %697 = vmatprep.subr.mxu0 0.0
        %698 = vmatpush1.msra.mxu0 0.0
        %699 = vmatprep.subr.mxu0 0.0
        %700 = vmatpush1.msra.mxu0 0.0
        %701 = vmatprep.subr.mxu0 0.0
        %702 = vmatpush1.msra.mxu0 0.0
        %703 = vmatprep.subr.mxu0 0.0
        %704 = vmatpush1.msra.mxu0 0.0
        %705 = vmatprep.subr.mxu0 0.0
        %706 = vmatpush1.msra.mxu0 0.0
        %707 = vmatprep.subr.mxu0 0.0
        %708 = vmatpush1.msra.mxu0 0.0
        %709 = vmatprep.subr.mxu0 0.0
        %710 = vmatpush1.msra.mxu0 0.0
        %711 = vmatprep.subr.mxu0 0.0
        %712 = vmatpush1.msra.mxu0 0.0
        %713 = vmatprep.subr.mxu0 0.0
        %714 = vmatpush1.msra.mxu0 0.0
        %715 = vmatprep.subr.mxu0 0.0
        %716 = vmatpush1.msra.mxu0 0.0
        %717 = vmatprep.subr.mxu0 0.0
        %718 = vmatpush1.msra.mxu0 0.0
        %719 = vmatprep.subr.mxu0 0.0
        %720 = vmatpush1.msra.mxu0 0.0
        %721 = vmatprep.subr.mxu0 0.0
        %722 = vmatpush1.msra.mxu0 0.0
        %723 = vmatprep.mubr.f32.mxu0 0.0
        %724 = vmatmul.mubr.f32.gmra.mrb[0].mxu0 %v515
        %v725 = vpop.f32.mrb[0].mxu0
        %v726 = vadd.f32 %v487, %v725
        %v727 = vpop.f32.mrb[0].mxu0
        %v728 = vadd.f32 %v491, %v727
        %729 = vdwg.mxu0
        %730 = vmatprep.subr.mxu0 %v435
        %731 = vmatpush1.msra.mxu0 %v434
        %732 = vmatprep.subr.mxu0 %v444
        %733 = vmatpush1.msra.mxu0 %v443
        %734 = vmatprep.subr.mxu0 %v453
        %735 = vmatpush1.msra.mxu0 %v452
        %736 = vmatprep.subr.mxu0 %v462
        %737 = vmatpush1.msra.mxu0 %v461
        %738 = vmatprep.subr.mxu0 0.0
        %739 = vmatpush1.msra.mxu0 0.0
        %740 = vmatprep.subr.mxu0 0.0
        %741 = vmatpush1.msra.mxu0 0.0
        %742 = vmatprep.subr.mxu0 0.0
        %743 = vmatpush1.msra.mxu0 0.0
        %744 = vmatprep.subr.mxu0 0.0
        %745 = vmatpush1.msra.mxu0 0.0
        %746 = vmatprep.subr.mxu0 0.0
        %747 = vmatpush1.msra.mxu0 0.0
        %748 = vmatprep.subr.mxu0 0.0
        %749 = vmatpush1.msra.mxu0 0.0
        %750 = vmatprep.subr.mxu0 0.0
        %751 = vmatpush1.msra.mxu0 0.0
        %752 = vmatprep.subr.mxu0 0.0
        %753 = vmatpush1.msra.mxu0 0.0
        %754 = vmatprep.subr.mxu0 0.0
        %755 = vmatpush1.msra.mxu0 0.0
        %756 = vmatprep.subr.mxu0 0.0
        %757 = vmatpush1.msra.mxu0 0.0
        %758 = vmatprep.subr.mxu0 0.0
        %759 = vmatpush1.msra.mxu0 0.0
        %760 = vmatprep.subr.mxu0 0.0
        %761 = vmatpush1.msra.mxu0 0.0
        %762 = vmatprep.subr.mxu0 0.0
        %763 = vmatpush1.msra.mxu0 0.0
        %764 = vmatprep.subr.mxu0 0.0
        %765 = vmatpush1.msra.mxu0 0.0
        %766 = vmatprep.subr.mxu0 0.0
        %767 = vmatpush1.msra.mxu0 0.0
        %768 = vmatprep.subr.mxu0 0.0
        %769 = vmatpush1.msra.mxu0 0.0
        %770 = vmatprep.subr.mxu0 0.0
        %771 = vmatpush1.msra.mxu0 0.0
        %772 = vmatprep.subr.mxu0 0.0
        %773 = vmatpush1.msra.mxu0 0.0
        %774 = vmatprep.subr.mxu0 0.0
        %775 = vmatpush1.msra.mxu0 0.0
        %776 = vmatprep.subr.mxu0 0.0
        %777 = vmatpush1.msra.mxu0 0.0
        %778 = vmatprep.subr.mxu0 0.0
        %779 = vmatpush1.msra.mxu0 0.0
        %780 = vmatprep.subr.mxu0 0.0
        %781 = vmatpush1.msra.mxu0 0.0
        %782 = vmatprep.subr.mxu0 0.0
        %783 = vmatpush1.msra.mxu0 0.0
        %784 = vmatprep.subr.mxu0 0.0
        %785 = vmatpush1.msra.mxu0 0.0
        %786 = vmatprep.subr.mxu0 0.0
        %787 = vmatpush1.msra.mxu0 0.0
        %788 = vmatprep.subr.mxu0 0.0
        %789 = vmatpush1.msra.mxu0 0.0
        %790 = vmatprep.subr.mxu0 0.0
        %791 = vmatpush1.msra.mxu0 0.0
        %792 = vmatprep.subr.mxu0 0.0
        %793 = vmatpush1.msra.mxu0 0.0
        %794 = vmatprep.mubr.f32.mxu0 0.0
        %795 = vmatmul.mubr.f32.gmra.mrb[0].mxu0 %v515
        %v796 = vpop.f32.mrb[0].mxu0
        %v797 = vadd.f32 %v495, %v796
        %v798 = vpop.f32.mrb[0].mxu0
        %v799 = vadd.f32 %v499, %v798
        %800 = vdwg.mxu0
        %801 = vmatprep.subr.mxu0 0.0
        %802 = vmatpush1.msra.mxu0 %v436
        %803 = vmatprep.subr.mxu0 0.0
        %804 = vmatpush1.msra.mxu0 %v445
        %805 = vmatprep.subr.mxu0 0.0
        %806 = vmatpush1.msra.mxu0 %v454
        %807 = vmatprep.subr.mxu0 0.0
        %808 = vmatpush1.msra.mxu0 %v463
        %809 = vmatprep.subr.mxu0 0.0
        %810 = vmatpush1.msra.mxu0 0.0
        %811 = vmatprep.subr.mxu0 0.0
        %812 = vmatpush1.msra.mxu0 0.0
        %813 = vmatprep.subr.mxu0 0.0
        %814 = vmatpush1.msra.mxu0 0.0
        %815 = vmatprep.subr.mxu0 0.0
        %816 = vmatpush1.msra.mxu0 0.0
        %817 = vmatprep.subr.mxu0 0.0
        %818 = vmatpush1.msra.mxu0 0.0
        %819 = vmatprep.subr.mxu0 0.0
        %820 = vmatpush1.msra.mxu0 0.0
        %821 = vmatprep.subr.mxu0 0.0
        %822 = vmatpush1.msra.mxu0 0.0
        %823 = vmatprep.subr.mxu0 0.0
        %824 = vmatpush1.msra.mxu0 0.0
        %825 = vmatprep.subr.mxu0 0.0
        %826 = vmatpush1.msra.mxu0 0.0
        %827 = vmatprep.subr.mxu0 0.0
        %828 = vmatpush1.msra.mxu0 0.0
        %829 = vmatprep.subr.mxu0 0.0
        %830 = vmatpush1.msra.mxu0 0.0
        %831 = vmatprep.subr.mxu0 0.0
        %832 = vmatpush1.msra.mxu0 0.0
        %833 = vmatprep.subr.mxu0 0.0
        %834 = vmatpush1.msra.mxu0 0.0
        %835 = vmatprep.subr.mxu0 0.0
        %836 = vmatpush1.msra.mxu0 0.0
        %837 = vmatprep.subr.mxu0 0.0
        %838 = vmatpush1.msra.mxu0 0.0
        %839 = vmatprep.subr.mxu0 0.0
        %840 = vmatpush1.msra.mxu0 0.0
        %841 = vmatprep.subr.mxu0 0.0
        %842 = vmatpush1.msra.mxu0 0.0
        %843 = vmatprep.subr.mxu0 0.0
        %844 = vmatpush1.msra.mxu0 0.0
        %845 = vmatprep.subr.mxu0 0.0
        %846 = vmatpush1.msra.mxu0 0.0
        %847 = vmatprep.subr.mxu0 0.0
        %848 = vmatpush1.msra.mxu0 0.0
        %849 = vmatprep.subr.mxu0 0.0
        %850 = vmatpush1.msra.mxu0 0.0
        %851 = vmatprep.subr.mxu0 0.0
        %852 = vmatpush1.msra.mxu0 0.0
        %853 = vmatprep.subr.mxu0 0.0
        %854 = vmatpush1.msra.mxu0 0.0
        %855 = vmatprep.subr.mxu0 0.0
        %856 = vmatpush1.msra.mxu0 0.0
        %857 = vmatprep.subr.mxu0 0.0
        %858 = vmatpush1.msra.mxu0 0.0
        %859 = vmatprep.subr.mxu0 0.0
        %860 = vmatpush1.msra.mxu0 0.0
        %861 = vmatprep.subr.mxu0 0.0
        %862 = vmatpush1.msra.mxu0 0.0
        %863 = vmatprep.subr.mxu0 0.0
        %864 = vmatpush1.msra.mxu0 0.0
        %865 = vmatprep.mubr.f32.mxu0 0.0
        %866 = vmatmul.mubr.f32.gmra.mrb[0].mxu0 %v515
        %v867 = vpop.f32.mrb[0].mxu0
        %v868 = vadd.f32 %v503, %v867
        %v869 = vpop.f32.mrb[0].mxu0
        %870 = vdwg.mxu0
        %v871 = vmax.f32 %v797, 0.0
        %v872 = vmax.f32 %v799, 0.0
        %v873 = vmax.f32 %v584, 0.0
        %v874 = vmax.f32 %v586, 0.0
        %vm875 = vcmask 31744
        %v876 = vsel %vm875, %v655, -inf
        %877 = vmax.xlane.f32.xlu0 %v876
        %v878 = vpop.xlane.xlu0 %877
        %v879 = vsub.f32 %v655, %v878
        %v880 = vmul.f32 %v879, 1.442695
        %v881 = vpow.pop %v880
        %v882 = vsel %vm875, %v881, 0.0
        %883 = vadd.xlane.f32.xlu0 %v882
        %v884 = vpop.xlane.xlu0 %883
        %v885 = vrcp.pop %v884
        %v886 = vmul.f32 %v881, %v885
        %888 = vset.pattern.permute.xlu0 0
        %889 = vperm.xlu0 %888, %v886
        %v890 = vpop.permute.xlu0 %889
        %v892 = vmul.f32 %v890, %v873
        %893 = vset.pattern.permute.xlu0 1
        %894 = vperm.xlu0 %893, %v886
        %v895 = vpop.permute.xlu0 %894
        %v897 = vmul.f32 %v895, %v874
        %v898 = vadd.f32 %v892, %v897
        %899 = vset.pattern.permute.xlu0 2
        %900 = vperm.xlu0 %899, %v886
        %v901 = vpop.permute.xlu0 %900
        %v903 = vmul.f32 %v901, %v871
        %v904 = vadd.f32 %v898, %v903
        %905 = vset.pattern.permute.xlu0 3
        %906 = vperm.xlu0 %905, %v886
        %v907 = vpop.permute.xlu0 %906
        %v909 = vmul.f32 %v907, %v872
        %v910 = vadd.f32 %v904, %v909
        %v911 = vmax.f32 %v657, 0.0
        %v912 = vmax.f32 %v726, 0.0
        %v913 = vsel %vm875, %v728, -inf
        %914 = vmax.xlane.f32.xlu0 %v913
        %v915 = vpop.xlane.xlu0 %914
        %v916 = vsub.f32 %v728, %v915
        %v917 = vmul.f32 %v916, 1.442695
        %v918 = vpow.pop %v917
        %v919 = vsel %vm875, %v918, 0.0
        %920 = vadd.xlane.f32.xlu0 %v919
        %v921 = vpop.xlane.xlu0 %920
        %v922 = vrcp.pop %v921
        %v923 = vmul.f32 %v918, %v922
        %925 = vset.pattern.permute.xlu0 0
        %926 = vperm.xlu0 %925, %v923
        %v927 = vpop.permute.xlu0 %926
        %v929 = vmul.f32 %v927, %v911
        %930 = vset.pattern.permute.xlu0 1
        %931 = vperm.xlu0 %930, %v923
        %v932 = vpop.permute.xlu0 %931
        %v934 = vmul.f32 %v932, %v912
        %v935 = vadd.f32 %v929, %v934
        %936 = vset.pattern.permute.xlu0 2
        %937 = vperm.xlu0 %936, %v923
        %v938 = vpop.permute.xlu0 %937
        %v940 = vmul.f32 %v938, %v871
        %v941 = vadd.f32 %v935, %v940
        %942 = vset.pattern.permute.xlu0 3
        %943 = vperm.xlu0 %942, %v923
        %v944 = vpop.permute.xlu0 %943
        %v946 = vmul.f32 %v944, %v872
        %v947 = vadd.f32 %v941, %v946
        %vm948 = vcmask 48128
        %v949 = vsel %vm948, %v868, -inf
        %950 = vmax.xlane.f32.xlu0 %v949
        %v951 = vpop.xlane.xlu0 %950
        %v952 = vsub.f32 %v868, %v951
        %v953 = vmul.f32 %v952, 1.442695
        %v954 = vpow.pop %v953
        %v955 = vsel %vm948, %v954, 0.0
        %956 = vadd.xlane.f32.xlu0 %v955
        %v957 = vpop.xlane.xlu0 %956
        %v958 = vrcp.pop %v957
        %v959 = vmul.f32 %v954, %v958
        %961 = vset.pattern.permute.xlu0 0
        %962 = vperm.xlu0 %961, %v959
        %v963 = vpop.permute.xlu0 %962
        %v965 = vmul.f32 %v963, %v873
        %966 = vset.pattern.permute.xlu0 1
        %967 = vperm.xlu0 %966, %v959
        %v968 = vpop.permute.xlu0 %967
        %v970 = vmul.f32 %v968, %v874
        %v971 = vadd.f32 %v965, %v970
        %972 = vset.pattern.permute.xlu0 2
        %973 = vperm.xlu0 %972, %v959
        %v974 = vpop.permute.xlu0 %973
        %v976 = vmul.f32 %v974, %v911
        %v977 = vadd.f32 %v971, %v976
        %978 = vset.pattern.permute.xlu0 3
        %979 = vperm.xlu0 %978, %v959
        %v980 = vpop.permute.xlu0 %979
        %v982 = vmul.f32 %v980, %v912
        %v983 = vadd.f32 %v977, %v982
        %984 = vset.pattern.permute.xlu0 4
        %985 = vperm.xlu0 %984, %v959
        %v986 = vpop.permute.xlu0 %985
        %v988 = vmul.f32 %v986, %v871
        %v989 = vadd.f32 %v983, %v988
        %990 = vset.pattern.permute.xlu0 5
        %991 = vperm.xlu0 %990, %v959
        %v992 = vpop.permute.xlu0 %991
        %v994 = vmul.f32 %v992, %v872
        %v995 = vadd.f32 %v989, %v994
        %v996 = vld [vmem:[#allocation7] sm:$0xff]
        %v997 = vld [vmem:[#allocation7 + $0x8] sm:$0xff]
        %v998 = vld [vmem:[#allocation7 + $0x10] sm:$0xff]
        %v999 = vld [vmem:[#allocation7 + $0x18] sm:$0xff]
        %v1000 = vld [vmem:[#allocation7 + $0x20] sm:$0xff]
        %v1001 = vld [vmem:[#allocation7 + $0x28] sm:$0xff]
        %v1002 = vld [vmem:[#allocation7 + $0x30] sm:$0xff]
        %v1003 = vld [vmem:[#allocation7 + $0x38] sm:$0xff]
        %v1004 = vld [vmem:[#allocation7 + $0x40] sm:$0xff]
        %v1005 = vld [vmem:[#allocation7 + $0x48] sm:$0xff]
        %v1006 = vld [vmem:[#allocation7 + $0x50] sm:$0xff]
        %v1007 = vld [vmem:[#allocation7 + $0x58] sm:$0xff]
        %v1008 = vld [vmem:[#allocation7 + $0x60] sm:$0xff]
        %v1009 = vld [vmem:[#allocation7 + $0x68] sm:$0xff]
        %v1010 = vld [vmem:[#allocation7 + $0x70] sm:$0xff]
        %v1011 = vld [vmem:[#allocation7 + $0x78] sm:$0xff]
        %v1012 = vld [vmem:[#allocation7 + $0x80] sm:$0xff]
        %v1013 = vld [vmem:[#allocation7 + $0x88] sm:$0xff]
        %v1014 = vld [vmem:[#allocation7 + $0x90] sm:$0xff]
        %v1015 = vld [vmem:[#allocation7 + $0x98] sm:$0xff]
        %v1016 = vld [vmem:[#allocation7 + $0xa0] sm:$0xff]
        %v1017 = vld [vmem:[#allocation7 + $0xa8] sm:$0xff]
        %v1018 = vld [vmem:[#allocation7 + $0xb0] sm:$0xff]
        %v1019 = vld [vmem:[#allocation7 + $0xb8] sm:$0xff]
        %v1020 = vld [vmem:[#allocation7 + $0xc0] sm:$0xff]
        %v1021 = vld [vmem:[#allocation7 + $0xc8] sm:$0xff]
        %v1022 = vld [vmem:[#allocation7 + $0xd0] sm:$0xff]
        %v1023 = vld [vmem:[#allocation7 + $0xd8] sm:$0xff]
        %v1024 = vld [vmem:[#allocation7 + $0xe0] sm:$0xff]
        %v1025 = vld [vmem:[#allocation7 + $0xe8] sm:$0xff]
        %v1026 = vld [vmem:[#allocation7 + $0xf0] sm:$0xff]
        %v1027 = vld [vmem:[#allocation7 + $0xf8] sm:$0xff]
        %v1028 = vld [vmem:[#allocation7 + $0x100] sm:$0xff]
        %v1029 = vld [vmem:[#allocation7 + $0x108] sm:$0xff]
        %v1030 = vld [vmem:[#allocation7 + $0x110] sm:$0xff]
        %v1031 = vld [vmem:[#allocation7 + $0x118] sm:$0xff]
        %v1032 = vld [vmem:[#allocation7 + $0x120] sm:$0xff]
        %v1033 = vld [vmem:[#allocation7 + $0x128] sm:$0xff]
        %v1034 = vld [vmem:[#allocation7 + $0x130] sm:$0xff]
        %v1035 = vld [vmem:[#allocation7 + $0x138] sm:$0xff]
        %v1036 = vld [vmem:[#allocation7 + $0x140] sm:$0xff]
        %v1037 = vld [vmem:[#allocation7 + $0x148] sm:$0xff]
        %v1038 = vld [vmem:[#allocation7 + $0x150] sm:$0xff]
        %v1039 = vld [vmem:[#allocation7 + $0x158] sm:$0xff]
        %v1040 = vld [vmem:[#allocation7 + $0x160] sm:$0xff]
        %v1041 = vld [vmem:[#allocation7 + $0x168] sm:$0xff]
        %v1042 = vld [vmem:[#allocation7 + $0x170] sm:$0xff]
        %v1043 = vld [vmem:[#allocation7 + $0x178] sm:$0xff]
        %v1044 = vld [vmem:[#allocation7 + $0x180] sm:$0xff]
        %v1045 = vld [vmem:[#allocation7 + $0x188] sm:$0xff]
        %v1046 = vld [vmem:[#allocation7 + $0x190] sm:$0xff]
        %v1047 = vld [vmem:[#allocation7 + $0x198] sm:$0xff]
        %v1048 = vld [vmem:[#allocation7 + $0x1a0] sm:$0xff]
        %v1049 = vld [vmem:[#allocation7 + $0x1a8] sm:$0xff]
        %v1050 = vld [vmem:[#allocation7 + $0x1b0] sm:$0xff]
        %v1051 = vld [vmem:[#allocation7 + $0x1b8] sm:$0xff]
        %v1052 = vld [vmem:[#allocation7 + $0x1c0] sm:$0xff]
        %v1053 = vld [vmem:[#allocation7 + $0x1c8] sm:$0xff]
        %v1054 = vld [vmem:[#allocation7 + $0x1d0] sm:$0xff]
        %v1055 = vld [vmem:[#allocation7 + $0x1d8] sm:$0xff]
        %v1056 = vld [vmem:[#allocation7 + $0x1e0] sm:$0xff]
        %v1057 = vld [vmem:[#allocation7 + $0x1e8] sm:$0xff]
        %v1058 = vld [vmem:[#allocation7 + $0x1f0] sm:$0xff]
        %v1059 = vld [vmem:[#allocation7 + $0x1f8] sm:$0xff]
        %v1060 = vld [vmem:[#allocation7 + $0x200] sm:$0xff]
        %v1061 = vld [vmem:[#allocation7 + $0x208] sm:$0xff]
        %v1062 = vld [vmem:[#allocation7 + $0x210] sm:$0xff]
        %v1063 = vld [vmem:[#allocation7 + $0x218] sm:$0xff]
        %v1064 = vld [vmem:[#allocation7 + $0x220] sm:$0xff]
        %v1065 = vld [vmem:[#allocation7 + $0x228] sm:$0xff]
        %v1066 = vld [vmem:[#allocation7 + $0x230] sm:$0xff]
        %v1067 = vld [vmem:[#allocation7 + $0x238] sm:$0xff]
        %v1068 = vld [vmem:[#allocation7 + $0x240] sm:$0xff]
        %v1069 = vld [vmem:[#allocation7 + $0x248] sm:$0xff]
        %v1070 = vld [vmem:[#allocation7 + $0x250] sm:$0xff]
        %v1071 = vld [vmem:[#allocation7 + $0x258] sm:$0xff]
        %v1072 = vld [vmem:[#allocation7 + $0x260] sm:$0xff]
        %v1073 = vld [vmem:[#allocation7 + $0x268] sm:$0xff]
        %v1074 = vld [vmem:[#allocation7 + $0x270] sm:$0xff]
        %v1075 = vld [vmem:[#allocation7 + $0x278] sm:$0xff]
        %v1076 = vld [vmem:[#allocation7 + $0x280] sm:$0xff]
        %v1077 = vld [vmem:[#allocation7 + $0x288] sm:$0xff]
        %v1078 = vld [vmem:[#allocation7 + $0x290] sm:$0xff]
        %v1079 = vld [vmem:[#allocation7 + $0x298] sm:$0xff]
        %v1080 = vld [vmem:[#allocation7 + $0x2a0] sm:$0xff]
        %v1081 = vld [vmem:[#allocation7 + $0x2a8] sm:$0xff]
        %v1082 = vld [vmem:[#allocation7 + $0x2b0] sm:$0xff]
        %v1083 = vld [vmem:[#allocation7 + $0x2b8] sm:$0xff]
        %v1084 = vld [vmem:[#allocation7 + $0x2c0] sm:$0xff]
        %v1085 = vld [vmem:[#allocation7 + $0x2c8] sm:$0xff]
        %v1086 = vld [vmem:[#allocation7 + $0x2d0] sm:$0xff]
        %v1087 = vld [vmem:[#allocation7 + $0x2d8] sm:$0xff]
        %v1088 = vld [vmem:[#allocation7 + $0x2e0] sm:$0xff]
        %v1089 = vld [vmem:[#allocation7 + $0x2e8] sm:$0xff]
        %v1090 = vld [vmem:[#allocation7 + $0x2f0] sm:$0xff]
        %v1091 = vld [vmem:[#allocation7 + $0x2f8] sm:$0xff]
        %v1092 = vld [vmem:[#allocation7 + $0x300] sm:$0xff]
        %v1093 = vld [vmem:[#allocation7 + $0x308] sm:$0xff]
        %v1094 = vld [vmem:[#allocation7 + $0x310] sm:$0xff]
        %v1095 = vld [vmem:[#allocation7 + $0x318] sm:$0xff]
        %v1096 = vld [vmem:[#allocation7 + $0x320] sm:$0xff]
        %v1097 = vld [vmem:[#allocation7 + $0x328] sm:$0xff]
        %v1098 = vld [vmem:[#allocation7 + $0x330] sm:$0xff]
        %v1099 = vld [vmem:[#allocation7 + $0x338] sm:$0xff]
        %v1100 = vld [vmem:[#allocation7 + $0x340] sm:$0xff]
        %v1101 = vld [vmem:[#allocation7 + $0x348] sm:$0xff]
        %v1102 = vld [vmem:[#allocation7 + $0x350] sm:$0xff]
        %v1103 = vld [vmem:[#allocation7 + $0x358] sm:$0xff]
        %v1104 = vld [vmem:[#allocation7 + $0x360] sm:$0xff]
        %v1105 = vld [vmem:[#allocation7 + $0x368] sm:$0xff]
        %v1106 = vld [vmem:[#allocation7 + $0x370] sm:$0xff]
        %v1107 = vld [vmem:[#allocation7 + $0x378] sm:$0xff]
        %v1108 = vld [vmem:[#allocation7 + $0x380] sm:$0xff]
        %v1109 = vld [vmem:[#allocation7 + $0x388] sm:$0xff]
        %v1110 = vld [vmem:[#allocation7 + $0x390] sm:$0xff]
        %v1111 = vld [vmem:[#allocation7 + $0x398] sm:$0xff]
        %v1112 = vld [vmem:[#allocation7 + $0x3a0] sm:$0xff]
        %v1113 = vld [vmem:[#allocation7 + $0x3a8] sm:$0xff]
        %v1114 = vld [vmem:[#allocation7 + $0x3b0] sm:$0xff]
        %v1115 = vld [vmem:[#allocation7 + $0x3b8] sm:$0xff]
        %v1116 = vld [vmem:[#allocation7 + $0x3c0] sm:$0xff]
        %v1117 = vld [vmem:[#allocation7 + $0x3c8] sm:$0xff]
        %v1118 = vld [vmem:[#allocation7 + $0x3d0] sm:$0xff]
        %v1119 = vld [vmem:[#allocation7 + $0x3d8] sm:$0xff]
        %v1120 = vld [vmem:[#allocation7 + $0x3e0] sm:$0xff]
        %v1121 = vld [vmem:[#allocation7 + $0x3e8] sm:$0xff]
        %v1122 = vld [vmem:[#allocation7 + $0x3f0] sm:$0xff]
        %v1123 = vld [vmem:[#allocation7 + $0x3f8] sm:$0xff]
        %v1124 = vld [vmem:[#allocation7 + $0x400] sm:$0xff]
        %v1125 = vld [vmem:[#allocation7 + $0x408] sm:$0xff]
        %v1126 = vld [vmem:[#allocation7 + $0x410] sm:$0xff]
        %v1127 = vld [vmem:[#allocation7 + $0x418] sm:$0xff]
        %v1128 = vld [vmem:[#allocation7 + $0x420] sm:$0xff]
        %v1129 = vld [vmem:[#allocation7 + $0x428] sm:$0xff]
        %v1130 = vld [vmem:[#allocation7 + $0x430] sm:$0xff]
        %v1131 = vld [vmem:[#allocation7 + $0x438] sm:$0xff]
        %v1132 = vld [vmem:[#allocation7 + $0x440] sm:$0xff]
        %v1133 = vld [vmem:[#allocation7 + $0x448] sm:$0xff]
        %v1134 = vld [vmem:[#allocation7 + $0x450] sm:$0xff]
        %v1135 = vld [vmem:[#allocation7 + $0x458] sm:$0xff]
        %v1136 = vld [vmem:[#allocation7 + $0x460] sm:$0xff]
        %v1137 = vld [vmem:[#allocation7 + $0x468] sm:$0xff]
        %v1138 = vld [vmem:[#allocation7 + $0x470] sm:$0xff]
        %v1139 = vld [vmem:[#allocation7 + $0x478] sm:$0xff]
        %v1140 = vld [vmem:[#allocation7 + $0x480] sm:$0xff]
        %v1141 = vld [vmem:[#allocation7 + $0x488] sm:$0xff]
        %v1142 = vld [vmem:[#allocation7 + $0x490] sm:$0xff]
        %v1143 = vld [vmem:[#allocation7 + $0x498] sm:$0xff]
        %v1144 = vld [vmem:[#allocation7 + $0x4a0] sm:$0xff]
        %v1145 = vld [vmem:[#allocation7 + $0x4a8] sm:$0xff]
        %v1146 = vld [vmem:[#allocation7 + $0x4b0] sm:$0xff]
        %v1147 = vld [vmem:[#allocation7 + $0x4b8] sm:$0xff]
        %v1148 = vld [vmem:[#allocation7 + $0x4c0] sm:$0xff]
        %v1149 = vld [vmem:[#allocation7 + $0x4c8] sm:$0xff]
        %v1150 = vld [vmem:[#allocation7 + $0x4d0] sm:$0xff]
        %v1151 = vld [vmem:[#allocation7 + $0x4d8] sm:$0xff]
        %v1152 = vld [vmem:[#allocation7 + $0x4e0] sm:$0xff]
        %v1153 = vld [vmem:[#allocation7 + $0x4e8] sm:$0xff]
        %v1154 = vld [vmem:[#allocation7 + $0x4f0] sm:$0xff]
        %v1155 = vld [vmem:[#allocation7 + $0x4f8] sm:$0xff]
        %v1156 = vld [vmem:[#allocation7 + $0x500] sm:$0xff]
        %v1157 = vld [vmem:[#allocation7 + $0x508] sm:$0xff]
        %v1158 = vld [vmem:[#allocation7 + $0x510] sm:$0xff]
        %v1159 = vld [vmem:[#allocation7 + $0x518] sm:$0xff]
        %v1160 = vld [vmem:[#allocation7 + $0x520] sm:$0xff]
        %v1161 = vld [vmem:[#allocation7 + $0x528] sm:$0xff]
        %v1162 = vld [vmem:[#allocation7 + $0x530] sm:$0xff]
        %v1163 = vld [vmem:[#allocation7 + $0x538] sm:$0xff]
        %v1164 = vld [vmem:[#allocation7 + $0x540] sm:$0xff]
        %v1165 = vld [vmem:[#allocation7 + $0x548] sm:$0xff]
        %v1166 = vld [vmem:[#allocation7 + $0x550] sm:$0xff]
        %v1167 = vld [vmem:[#allocation7 + $0x558] sm:$0xff]
        %v1168 = vld [vmem:[#allocation7 + $0x560] sm:$0xff]
        %v1169 = vld [vmem:[#allocation7 + $0x568] sm:$0xff]
        %v1170 = vld [vmem:[#allocation7 + $0x570] sm:$0xff]
        %v1171 = vld [vmem:[#allocation7 + $0x578] sm:$0xff]
        %v1172 = vld [vmem:[#allocation7 + $0x580] sm:$0xff]
        %v1173 = vld [vmem:[#allocation7 + $0x588] sm:$0xff]
        %v1174 = vld [vmem:[#allocation7 + $0x590] sm:$0xff]
        %v1175 = vld [vmem:[#allocation7 + $0x598] sm:$0xff]
        %v1176 = vld [vmem:[#allocation7 + $0x5a0] sm:$0xff]
        %v1177 = vld [vmem:[#allocation7 + $0x5a8] sm:$0xff]
        %v1178 = vld [vmem:[#allocation7 + $0x5b0] sm:$0xff]
        %v1179 = vld [vmem:[#allocation7 + $0x5b8] sm:$0xff]
        %v1180 = vld [vmem:[#allocation7 + $0x5c0] sm:$0xff]
        %v1181 = vld [vmem:[#allocation7 + $0x5c8] sm:$0xff]
        %v1182 = vld [vmem:[#allocation7 + $0x5d0] sm:$0xff]
        %v1183 = vld [vmem:[#allocation7 + $0x5d8] sm:$0xff]
        %v1184 = vld [vmem:[#allocation7 + $0x5e0] sm:$0xff]
        %v1185 = vld [vmem:[#allocation7 + $0x5e8] sm:$0xff]
        %v1186 = vld [vmem:[#allocation7 + $0x5f0] sm:$0xff]
        %v1187 = vld [vmem:[#allocation7 + $0x5f8] sm:$0xff]
        %v1188 = vld [vmem:[#allocation7 + $0x600] sm:$0xff]
        %v1189 = vld [vmem:[#allocation7 + $0x608] sm:$0xff]
        %v1190 = vld [vmem:[#allocation7 + $0x610] sm:$0xff]
        %v1191 = vld [vmem:[#allocation7 + $0x618] sm:$0xff]
        %v1192 = vld [vmem:[#allocation7 + $0x620] sm:$0xff]
        %v1193 = vld [vmem:[#allocation7 + $0x628] sm:$0xff]
        %v1194 = vld [vmem:[#allocation7 + $0x630] sm:$0xff]
        %v1195 = vld [vmem:[#allocation7 + $0x638] sm:$0xff]
        %v1196 = vld [vmem:[#allocation7 + $0x640] sm:$0xff]
        %v1197 = vld [vmem:[#allocation7 + $0x648] sm:$0xff]
        %v1198 = vld [vmem:[#allocation7 + $0x650] sm:$0xff]
        %v1199 = vld [vmem:[#allocation7 + $0x658] sm:$0xff]
        %v1200 = vld [vmem:[#allocation7 + $0x660] sm:$0xff]
        %v1201 = vld [vmem:[#allocation7 + $0x668] sm:$0xff]
        %v1202 = vld [vmem:[#allocation7 + $0x670] sm:$0xff]
        %v1203 = vld [vmem:[#allocation7 + $0x678] sm:$0xff]
        %v1204 = vld [vmem:[#allocation7 + $0x680] sm:$0xff]
        %v1205 = vld [vmem:[#allocation7 + $0x688] sm:$0xff]
        %v1206 = vld [vmem:[#allocation7 + $0x690] sm:$0xff]
        %v1207 = vld [vmem:[#allocation7 + $0x698] sm:$0xff]
        %v1208 = vld [vmem:[#allocation7 + $0x6a0] sm:$0xff]
        %v1209 = vld [vmem:[#allocation7 + $0x6a8] sm:$0xff]
        %v1210 = vld [vmem:[#allocation7 + $0x6b0] sm:$0xff]
        %v1211 = vld [vmem:[#allocation7 + $0x6b8] sm:$0xff]
        %v1212 = vld [vmem:[#allocation7 + $0x6c0] sm:$0xff]
        %v1213 = vld [vmem:[#allocation7 + $0x6c8] sm:$0xff]
        %v1214 = vld [vmem:[#allocation7 + $0x6d0] sm:$0xff]
        %v1215 = vld [vmem:[#allocation7 + $0x6d8] sm:$0xff]
        %v1216 = vld [vmem:[#allocation7 + $0x6e0] sm:$0xff]
        %v1217 = vld [vmem:[#allocation7 + $0x6e8] sm:$0xff]
        %v1218 = vld [vmem:[#allocation7 + $0x6f0] sm:$0xff]
        %v1219 = vld [vmem:[#allocation7 + $0x6f8] sm:$0xff]
        %v1220 = vld [vmem:[#allocation7 + $0x700] sm:$0xff]
        %v1221 = vld [vmem:[#allocation7 + $0x708] sm:$0xff]
        %v1222 = vld [vmem:[#allocation7 + $0x710] sm:$0xff]
        %v1223 = vld [vmem:[#allocation7 + $0x718] sm:$0xff]
        %v1224 = vld [vmem:[#allocation7 + $0x720] sm:$0xff]
        %v1225 = vld [vmem:[#allocation7 + $0x728] sm:$0xff]
        %v1226 = vld [vmem:[#allocation7 + $0x730] sm:$0xff]
        %v1227 = vld [vmem:[#allocation7 + $0x738] sm:$0xff]
        %v1228 = vld [vmem:[#allocation7 + $0x740] sm:$0xff]
        %v1229 = vld [vmem:[#allocation7 + $0x748] sm:$0xff]
        %v1230 = vld [vmem:[#allocation7 + $0x750] sm:$0xff]
        %v1231 = vld [vmem:[#allocation7 + $0x758] sm:$0xff]
        %v1232 = vld [vmem:[#allocation7 + $0x760] sm:$0xff]
        %v1233 = vld [vmem:[#allocation7 + $0x768] sm:$0xff]
        %v1234 = vld [vmem:[#allocation7 + $0x770] sm:$0xff]
        %v1235 = vld [vmem:[#allocation7 + $0x778] sm:$0xff]
        %v1236 = vld [vmem:[#allocation7 + $0x780] sm:$0xff]
        %v1237 = vld [vmem:[#allocation7 + $0x788] sm:$0xff]
        %v1238 = vld [vmem:[#allocation7 + $0x790] sm:$0xff]
        %v1239 = vld [vmem:[#allocation7 + $0x798] sm:$0xff]
        %v1240 = vld [vmem:[#allocation7 + $0x7a0] sm:$0xff]
        %v1241 = vld [vmem:[#allocation7 + $0x7a8] sm:$0xff]
        %v1242 = vld [vmem:[#allocation7 + $0x7b0] sm:$0xff]
        %v1243 = vld [vmem:[#allocation7 + $0x7b8] sm:$0xff]
        %v1244 = vld [vmem:[#allocation7 + $0x7c0] sm:$0xff]
        %v1245 = vld [vmem:[#allocation7 + $0x7c8] sm:$0xff]
        %v1246 = vld [vmem:[#allocation7 + $0x7d0] sm:$0xff]
        %v1247 = vld [vmem:[#allocation7 + $0x7d8] sm:$0xff]
        %v1248 = vld [vmem:[#allocation7 + $0x7e0] sm:$0xff]
        %v1249 = vld [vmem:[#allocation7 + $0x7e8] sm:$0xff]
        %v1250 = vld [vmem:[#allocation7 + $0x7f0] sm:$0xff]
        %v1251 = vld [vmem:[#allocation7 + $0x7f8] sm:$0xff]
        %v1252 = vld [vmem:[#allocation7 + $0x800] sm:$0xff]
        %v1253 = vld [vmem:[#allocation7 + $0x808] sm:$0xff]
        %v1254 = vld [vmem:[#allocation7 + $0x810] sm:$0xff]
        %v1255 = vld [vmem:[#allocation7 + $0x818] sm:$0xff]
        %v1256 = vld [vmem:[#allocation7 + $0x820] sm:$0xff]
        %v1257 = vld [vmem:[#allocation7 + $0x828] sm:$0xff]
        %v1258 = vld [vmem:[#allocation7 + $0x830] sm:$0xff]
        %v1259 = vld [vmem:[#allocation7 + $0x838] sm:$0xff]
        %v1260 = vld [vmem:[#allocation7 + $0x840] sm:$0xff]
        %v1261 = vld [vmem:[#allocation7 + $0x848] sm:$0xff]
        %v1262 = vld [vmem:[#allocation7 + $0x850] sm:$0xff]
        %v1263 = vld [vmem:[#allocation7 + $0x858] sm:$0xff]
        %v1264 = vld [vmem:[#allocation7 + $0x860] sm:$0xff]
        %v1265 = vld [vmem:[#allocation7 + $0x868] sm:$0xff]
        %v1266 = vld [vmem:[#allocation7 + $0x870] sm:$0xff]
        %v1267 = vld [vmem:[#allocation7 + $0x878] sm:$0xff]
        %v1268 = vld [vmem:[#allocation7 + $0x880] sm:$0xff]
        %v1269 = vld [vmem:[#allocation7 + $0x888] sm:$0xff]
        %v1270 = vld [vmem:[#allocation7 + $0x890] sm:$0xff]
        %v1271 = vld [vmem:[#allocation7 + $0x898] sm:$0xff]
        %v1272 = vld [vmem:[#allocation7 + $0x8a0] sm:$0xff]
        %v1273 = vld [vmem:[#allocation7 + $0x8a8] sm:$0xff]
        %v1274 = vld [vmem:[#allocation7 + $0x8b0] sm:$0xff]
        %v1275 = vld [vmem:[#allocation7 + $0x8b8] sm:$0xff]
        %v1276 = vld [vmem:[#allocation7 + $0x8c0] sm:$0xff]
        %v1277 = vld [vmem:[#allocation7 + $0x8c8] sm:$0xff]
        %v1278 = vld [vmem:[#allocation7 + $0x8d0] sm:$0xff]
        %v1279 = vld [vmem:[#allocation7 + $0x8d8] sm:$0xff]
        %v1280 = vld [vmem:[#allocation7 + $0x8e0] sm:$0xff]
        %v1281 = vld [vmem:[#allocation7 + $0x8e8] sm:$0xff]
        %v1282 = vld [vmem:[#allocation7 + $0x8f0] sm:$0xff]
        %v1283 = vld [vmem:[#allocation7 + $0x8f8] sm:$0xff]
        %v1284 = vld [vmem:[#allocation7 + $0x900] sm:$0xff]
        %v1285 = vld [vmem:[#allocation7 + $0x908] sm:$0xff]
        %v1286 = vld [vmem:[#allocation7 + $0x910] sm:$0xff]
        %v1287 = vld [vmem:[#allocation7 + $0x918] sm:$0xff]
        %v1288 = vld [vmem:[#allocation7 + $0x920] sm:$0xff]
        %v1289 = vld [vmem:[#allocation7 + $0x928] sm:$0xff]
        %v1290 = vld [vmem:[#allocation7 + $0x930] sm:$0xff]
        %v1291 = vld [vmem:[#allocation7 + $0x938] sm:$0xff]
        %v1292 = vld [vmem:[#allocation7 + $0x940] sm:$0xff]
        %v1293 = vld [vmem:[#allocation7 + $0x948] sm:$0xff]
        %v1294 = vld [vmem:[#allocation7 + $0x950] sm:$0xff]
        %v1295 = vld [vmem:[#allocation7 + $0x958] sm:$0xff]
        %v1296 = vld [vmem:[#allocation7 + $0x960] sm:$0xff]
        %v1297 = vld [vmem:[#allocation7 + $0x968] sm:$0xff]
        %v1298 = vld [vmem:[#allocation7 + $0x970] sm:$0xff]
        %v1299 = vld [vmem:[#allocation7 + $0x978] sm:$0xff]
        %v1300 = vld [vmem:[#allocation7 + $0x980] sm:$0xff]
        %v1301 = vld [vmem:[#allocation7 + $0x988] sm:$0xff]
        %v1302 = vld [vmem:[#allocation7 + $0x990] sm:$0xff]
        %v1303 = vld [vmem:[#allocation7 + $0x998] sm:$0xff]
        %v1304 = vld [vmem:[#allocation7 + $0x9a0] sm:$0xff]
        %v1305 = vld [vmem:[#allocation7 + $0x9a8] sm:$0xff]
        %v1306 = vld [vmem:[#allocation7 + $0x9b0] sm:$0xff]
        %v1307 = vld [vmem:[#allocation7 + $0x9b8] sm:$0xff]
        %v1308 = vld [vmem:[#allocation7 + $0x9c0] sm:$0xff]
        %v1309 = vld [vmem:[#allocation7 + $0x9c8] sm:$0xff]
        %v1310 = vld [vmem:[#allocation7 + $0x9d0] sm:$0xff]
        %v1311 = vld [vmem:[#allocation7 + $0x9d8] sm:$0xff]
        %v1312 = vld [vmem:[#allocation7 + $0x9e0] sm:$0xff]
        %v1313 = vld [vmem:[#allocation7 + $0x9e8] sm:$0xff]
        %v1314 = vld [vmem:[#allocation7 + $0x9f0] sm:$0xff]
        %v1315 = vld [vmem:[#allocation7 + $0x9f8] sm:$0xff]
        %v1316 = vld [vmem:[#allocation7 + $0xa00] sm:$0xff]
        %v1317 = vld [vmem:[#allocation7 + $0xa08] sm:$0xff]
        %v1318 = vld [vmem:[#allocation7 + $0xa10] sm:$0xff]
        %v1319 = vld [vmem:[#allocation7 + $0xa18] sm:$0xff]
        %v1320 = vld [vmem:[#allocation7 + $0xa20] sm:$0xff]
        %v1321 = vld [vmem:[#allocation7 + $0xa28] sm:$0xff]
        %v1322 = vld [vmem:[#allocation7 + $0xa30] sm:$0xff]
        %v1323 = vld [vmem:[#allocation7 + $0xa38] sm:$0xff]
        %v1324 = vld [vmem:[#allocation7 + $0xa40] sm:$0xff]
        %v1325 = vld [vmem:[#allocation7 + $0xa48] sm:$0xff]
        %v1326 = vld [vmem:[#allocation7 + $0xa50] sm:$0xff]
        %v1327 = vld [vmem:[#allocation7 + $0xa58] sm:$0xff]
        %v1328 = vld [vmem:[#allocation7 + $0xa60] sm:$0xff]
        %v1329 = vld [vmem:[#allocation7 + $0xa68] sm:$0xff]
        %v1330 = vld [vmem:[#allocation7 + $0xa70] sm:$0xff]
        %v1331 = vld [vmem:[#allocation7 + $0xa78] sm:$0xff]
        %v1332 = vld [vmem:[#allocation7 + $0xa80] sm:$0xff]
        %v1333 = vld [vmem:[#allocation7 + $0xa88] sm:$0xff]
        %v1334 = vld [vmem:[#allocation7 + $0xa90] sm:$0xff]
        %v1335 = vld [vmem:[#allocation7 + $0xa98] sm:$0xff]
        %v1336 = vld [vmem:[#allocation7 + $0xaa0] sm:$0xff]
        %v1337 = vld [vmem:[#allocation7 + $0xaa8] sm:$0xff]
        %v1338 = vld [vmem:[#allocation7 + $0xab0] sm:$0xff]
        %v1339 = vld [vmem:[#allocation7 + $0xab8] sm:$0xff]
        %v1340 = vld [vmem:[#allocation7 + $0xac0] sm:$0xff]
        %v1341 = vld [vmem:[#allocation7 + $0xac8] sm:$0xff]
        %v1342 = vld [vmem:[#allocation7 + $0xad0] sm:$0xff]
        %v1343 = vld [vmem:[#allocation7 + $0xad8] sm:$0xff]
        %v1344 = vld [vmem:[#allocation7 + $0xae0] sm:$0xff]
        %v1345 = vld [vmem:[#allocation7 + $0xae8] sm:$0xff]
        %v1346 = vld [vmem:[#allocation7 + $0xaf0] sm:$0xff]
        %v1347 = vld [vmem:[#allocation7 + $0xaf8] sm:$0xff]
        %v1348 = vld [vmem:[#allocation7 + $0xb00] sm:$0xff]
        %v1349 = vld [vmem:[#allocation7 + $0xb08] sm:$0xff]
        %v1350 = vld [vmem:[#allocation7 + $0xb10] sm:$0xff]
        %v1351 = vld [vmem:[#allocation7 + $0xb18] sm:$0xff]
        %v1352 = vld [vmem:[#allocation7 + $0xb20] sm:$0xff]
        %v1353 = vld [vmem:[#allocation7 + $0xb28] sm:$0xff]
        %v1354 = vld [vmem:[#allocation7 + $0xb30] sm:$0xff]
        %v1355 = vld [vmem:[#allocation7 + $0xb38] sm:$0xff]
        %v1356 = vld [vmem:[#allocation7 + $0xb40] sm:$0xff]
        %v1357 = vld [vmem:[#allocation7 + $0xb48] sm:$0xff]
        %v1358 = vld [vmem:[#allocation7 + $0xb50] sm:$0xff]
        %v1359 = vld [vmem:[#allocation7 + $0xb58] sm:$0xff]
        %v1360 = vld [vmem:[#allocation7 + $0xb60] sm:$0xff]
        %v1361 = vld [vmem:[#allocation7 + $0xb68] sm:$0xff]
        %v1362 = vld [vmem:[#allocation7 + $0xb70] sm:$0xff]
        %v1363 = vld [vmem:[#allocation7 + $0xb78] sm:$0xff]
        %v1364 = vld [vmem:[#allocation7 + $0xb80] sm:$0xff]
        %v1365 = vld [vmem:[#allocation7 + $0xb88] sm:$0xff]
        %v1366 = vld [vmem:[#allocation7 + $0xb90] sm:$0xff]
        %v1367 = vld [vmem:[#allocation7 + $0xb98] sm:$0xff]
        %v1368 = vld [vmem:[#allocation7 + $0xba0] sm:$0xff]
        %v1369 = vld [vmem:[#allocation7 + $0xba8] sm:$0xff]
        %v1370 = vld [vmem:[#allocation7 + $0xbb0] sm:$0xff]
        %v1371 = vld [vmem:[#allocation7 + $0xbb8] sm:$0xff]
        %v1372 = vld [vmem:[#allocation7 + $0xbc0] sm:$0xff]
        %v1373 = vld [vmem:[#allocation7 + $0xbc8] sm:$0xff]
        %v1374 = vld [vmem:[#allocation7 + $0xbd0] sm:$0xff]
        %v1375 = vld [vmem:[#allocation7 + $0xbd8] sm:$0xff]
        %v1376 = vld [vmem:[#allocation7 + $0xbe0] sm:$0xff]
        %v1377 = vld [vmem:[#allocation7 + $0xbe8] sm:$0xff]
        %v1378 = vld [vmem:[#allocation7 + $0xbf0] sm:$0xff]
        %v1379 = vld [vmem:[#allocation7 + $0xbf8] sm:$0xff]
        %v1380 = vld [vmem:[#allocation9] sm:$0xff]
        %v1382 = vlaneseq
        %v1383 = vshrl.u32 %v1382, 7
        %v1384 = vsub.s32 0, %v1383
        %v1385 = vrot.slane %v1380, %v1384
        %v1386 = vlaneseq
        %v1387 = vshrl.u32 %v1386, 7
        %v1388 = vsub.s32 1, %v1387
        %v1389 = vrot.slane %v1380, %v1388
        %v1390 = vlaneseq
        %v1391 = vshrl.u32 %v1390, 7
        %v1392 = vsub.s32 2, %v1391
        %v1393 = vrot.slane %v1380, %v1392
        %v1394 = vlaneseq
        %v1395 = vshrl.u32 %v1394, 7
        %v1396 = vsub.s32 3, %v1395
        %v1397 = vrot.slane %v1380, %v1396
        %v1398 = vlaneseq
        %v1399 = vshrl.u32 %v1398, 7
        %v1400 = vsub.s32 4, %v1399
        %v1401 = vrot.slane %v1380, %v1400
        %v1402 = vlaneseq
        %v1403 = vshrl.u32 %v1402, 7
        %v1404 = vsub.s32 5, %v1403
        %v1405 = vrot.slane %v1380, %v1404
        %v1406 = vlaneseq
        %v1407 = vshrl.u32 %v1406, 7
        %v1408 = vsub.s32 6, %v1407
        %v1409 = vrot.slane %v1380, %v1408
        %v1410 = vlaneseq
        %v1411 = vshrl.u32 %v1410, 7
        %v1412 = vsub.s32 7, %v1411
        %v1413 = vrot.slane %v1380, %v1412
        %1422 = vmatprep.subr.mxu0 %v997
        %1423 = vmatpush1.msra.mxu0 %v996
        %1424 = vmatprep.subr.mxu0 %v1005
        %1425 = vmatpush1.msra.mxu0 %v1004
        %1426 = vmatprep.subr.mxu0 %v1013
        %1427 = vmatpush1.msra.mxu0 %v1012
        %1428 = vmatprep.subr.mxu0 %v1021
        %1429 = vmatpush1.msra.mxu0 %v1020
        %1430 = vmatprep.subr.mxu0 %v1029
        %1431 = vmatpush1.msra.mxu0 %v1028
        %1432 = vmatprep.subr.mxu0 %v1037
        %1433 = vmatpush1.msra.mxu0 %v1036
        %1434 = vmatprep.subr.mxu0 %v1045
        %1435 = vmatpush1.msra.mxu0 %v1044
        %1436 = vmatprep.subr.mxu0 %v1053
        %1437 = vmatpush1.msra.mxu0 %v1052
        %1438 = vmatprep.subr.mxu0 %v1061
        %1439 = vmatpush1.msra.mxu0 %v1060
        %1440 = vmatprep.subr.mxu0 %v1069
        %1441 = vmatpush1.msra.mxu0 %v1068
        %1442 = vmatprep.subr.mxu0 %v1077
        %1443 = vmatpush1.msra.mxu0 %v1076
        %1444 = vmatprep.subr.mxu0 %v1085
        %1445 = vmatpush1.msra.mxu0 %v1084
        %1446 = vmatprep.subr.mxu0 %v1093
        %1447 = vmatpush1.msra.mxu0 %v1092
        %1448 = vmatprep.subr.mxu0 %v1101
        %1449 = vmatpush1.msra.mxu0 %v1100
        %1450 = vmatprep.subr.mxu0 %v1109
        %1451 = vmatpush1.msra.mxu0 %v1108
        %1452 = vmatprep.subr.mxu0 %v1117
        %1453 = vmatpush1.msra.mxu0 %v1116
        %1454 = vmatprep.subr.mxu0 %v1125
        %1455 = vmatpush1.msra.mxu0 %v1124
        %1456 = vmatprep.subr.mxu0 %v1133
        %1457 = vmatpush1.msra.mxu0 %v1132
        %1458 = vmatprep.subr.mxu0 %v1141
        %1459 = vmatpush1.msra.mxu0 %v1140
        %1460 = vmatprep.subr.mxu0 %v1149
        %1461 = vmatpush1.msra.mxu0 %v1148
        %1462 = vmatprep.subr.mxu0 %v1157
        %1463 = vmatpush1.msra.mxu0 %v1156
        %1464 = vmatprep.subr.mxu0 %v1165
        %1465 = vmatpush1.msra.mxu0 %v1164
        %1466 = vmatprep.subr.mxu0 %v1173
        %1467 = vmatpush1.msra.mxu0 %v1172
        %1468 = vmatprep.subr.mxu0 %v1181
        %1469 = vmatpush1.msra.mxu0 %v1180
        %1470 = vmatprep.subr.mxu0 %v1189
        %1471 = vmatpush1.msra.mxu0 %v1188
        %1472 = vmatprep.subr.mxu0 %v1197
        %1473 = vmatpush1.msra.mxu0 %v1196
        %1474 = vmatprep.subr.mxu0 %v1205
        %1475 = vmatpush1.msra.mxu0 %v1204
        %1476 = vmatprep.subr.mxu0 %v1213
        %1477 = vmatpush1.msra.mxu0 %v1212
        %1478 = vmatprep.subr.mxu0 %v1221
        %1479 = vmatpush1.msra.mxu0 %v1220
        %1480 = vmatprep.subr.mxu0 %v1229
        %1481 = vmatpush1.msra.mxu0 %v1228
        %1482 = vmatprep.subr.mxu0 %v1237
        %1483 = vmatpush1.msra.mxu0 %v1236
        %1484 = vmatprep.subr.mxu0 %v1245
        %1485 = vmatpush1.msra.mxu0 %v1244
        %1486 = vmatprep.mubr.f32.mxu0 %v947
        %1487 = vmatmul.mubr.f32.gmra.mrb[0].mxu0 %v910
        %v1488 = vpop.f32.mrb[0].mxu0
        %v1489 = vadd.f32 %v1385, %v1488
        %v1490 = vpop.f32.mrb[0].mxu0
        %v1491 = vadd.f32 %v1389, %v1490
        %1492 = vdwg.mxu0
        %1493 = vmatprep.subr.mxu0 %v1253
        %1494 = vmatpush1.msra.mxu0 %v1252
        %1495 = vmatprep.subr.mxu0 %v1261
        %1496 = vmatpush1.msra.mxu0 %v1260
        %1497 = vmatprep.subr.mxu0 %v1269
        %1498 = vmatpush1.msra.mxu0 %v1268
        %1499 = vmatprep.subr.mxu0 %v1277
        %1500 = vmatpush1.msra.mxu0 %v1276
        %1501 = vmatprep.subr.mxu0 %v1285
        %1502 = vmatpush1.msra.mxu0 %v1284
        %1503 = vmatprep.subr.mxu0 %v1293
        %1504 = vmatpush1.msra.mxu0 %v1292
        %1505 = vmatprep.subr.mxu0 %v1301
        %1506 = vmatpush1.msra.mxu0 %v1300
        %1507 = vmatprep.subr.mxu0 %v1309
        %1508 = vmatpush1.msra.mxu0 %v1308
        %1509 = vmatprep.subr.mxu0 %v1317
        %1510 = vmatpush1.msra.mxu0 %v1316
        %1511 = vmatprep.subr.mxu0 %v1325
        %1512 = vmatpush1.msra.mxu0 %v1324
        %1513 = vmatprep.subr.mxu0 %v1333
        %1514 = vmatpush1.msra.mxu0 %v1332
        %1515 = vmatprep.subr.mxu0 %v1341
        %1516 = vmatpush1.msra.mxu0 %v1340
        %1517 = vmatprep.subr.mxu0 %v1349
        %1518 = vmatpush1.msra.mxu0 %v1348
        %1519 = vmatprep.subr.mxu0 %v1357
        %1520 = vmatpush1.msra.mxu0 %v1356
        %1521 = vmatprep.subr.mxu0 %v1365
        %1522 = vmatpush1.msra.mxu0 %v1364
        %1523 = vmatprep.subr.mxu0 %v1373
        %1524 = vmatpush1.msra.mxu0 %v1372
        %1525 = vmatprep.subr.mxu0 0.0
        %1526 = vmatpush1.msra.mxu0 0.0
        %1527 = vmatprep.subr.mxu0 0.0
        %1528 = vmatpush1.msra.mxu0 0.0
        %1529 = vmatprep.subr.mxu0 0.0
        %1530 = vmatpush1.msra.mxu0 0.0
        %1531 = vmatprep.subr.mxu0 0.0
        %1532 = vmatpush1.msra.mxu0 0.0
        %1533 = vmatprep.subr.mxu0 0.0
        %1534 = vmatpush1.msra.mxu0 0.0
        %1535 = vmatprep.subr.mxu0 0.0
        %1536 = vmatpush1.msra.mxu0 0.0
        %1537 = vmatprep.subr.mxu0 0.0
        %1538 = vmatpush1.msra.mxu0 0.0
        %1539 = vmatprep.subr.mxu0 0.0
        %1540 = vmatpush1.msra.mxu0 0.0
        %1541 = vmatprep.subr.mxu0 0.0
        %1542 = vmatpush1.msra.mxu0 0.0
        %1543 = vmatprep.subr.mxu0 0.0
        %1544 = vmatpush1.msra.mxu0 0.0
        %1545 = vmatprep.subr.mxu0 0.0
        %1546 = vmatpush1.msra.mxu0 0.0
        %1547 = vmatprep.subr.mxu0 0.0
        %1548 = vmatpush1.msra.mxu0 0.0
        %1549 = vmatprep.subr.mxu0 0.0
        %1550 = vmatpush1.msra.mxu0 0.0
        %1551 = vmatprep.subr.mxu0 0.0
        %1552 = vmatpush1.msra.mxu0 0.0
        %1553 = vmatprep.subr.mxu0 0.0
        %1554 = vmatpush1.msra.mxu0 0.0
        %1555 = vmatprep.subr.mxu0 0.0
        %1556 = vmatpush1.msra.mxu0 0.0
        %1557 = vmatprep.mubr.f32.mxu0 0.0
        %1558 = vmatmul.mubr.f32.gmra.mrb[0].mxu0 %v995
        %v1559 = vpop.f32.mrb[0].mxu0
        %v1560 = vadd.f32 %v1489, %v1559
        %v1561 = vpop.f32.mrb[0].mxu0
        %v1562 = vadd.f32 %v1491, %v1561
        %1563 = vdwg.mxu0
        %1564 = vmatprep.subr.mxu0 %v999
        %1565 = vmatpush1.msra.mxu0 %v998
        %1566 = vmatprep.subr.mxu0 %v1007
        %1567 = vmatpush1.msra.mxu0 %v1006
        %1568 = vmatprep.subr.mxu0 %v1015
        %1569 = vmatpush1.msra.mxu0 %v1014
        %1570 = vmatprep.subr.mxu0 %v1023
        %1571 = vmatpush1.msra.mxu0 %v1022
        %1572 = vmatprep.subr.mxu0 %v1031
        %1573 = vmatpush1.msra.mxu0 %v1030
        %1574 = vmatprep.subr.mxu0 %v1039
        %1575 = vmatpush1.msra.mxu0 %v1038
        %1576 = vmatprep.subr.mxu0 %v1047
        %1577 = vmatpush1.msra.mxu0 %v1046
        %1578 = vmatprep.subr.mxu0 %v1055
        %1579 = vmatpush1.msra.mxu0 %v1054
        %1580 = vmatprep.subr.mxu0 %v1063
        %1581 = vmatpush1.msra.mxu0 %v1062
        %1582 = vmatprep.subr.mxu0 %v1071
        %1583 = vmatpush1.msra.mxu0 %v1070
        %1584 = vmatprep.subr.mxu0 %v1079
        %1585 = vmatpush1.msra.mxu0 %v1078
        %1586 = vmatprep.subr.mxu0 %v1087
        %1587 = vmatpush1.msra.mxu0 %v1086
        %1588 = vmatprep.subr.mxu0 %v1095
        %1589 = vmatpush1.msra.mxu0 %v1094
        %1590 = vmatprep.subr.mxu0 %v1103
        %1591 = vmatpush1.msra.mxu0 %v1102
        %1592 = vmatprep.subr.mxu0 %v1111
        %1593 = vmatpush1.msra.mxu0 %v1110
        %1594 = vmatprep.subr.mxu0 %v1119
        %1595 = vmatpush1.msra.mxu0 %v1118
        %1596 = vmatprep.subr.mxu0 %v1127
        %1597 = vmatpush1.msra.mxu0 %v1126
        %1598 = vmatprep.subr.mxu0 %v1135
        %1599 = vmatpush1.msra.mxu0 %v1134
        %1600 = vmatprep.subr.mxu0 %v1143
        %1601 = vmatpush1.msra.mxu0 %v1142
        %1602 = vmatprep.subr.mxu0 %v1151
        %1603 = vmatpush1.msra.mxu0 %v1150
        %1604 = vmatprep.subr.mxu0 %v1159
        %1605 = vmatpush1.msra.mxu0 %v1158
        %1606 = vmatprep.subr.mxu0 %v1167
        %1607 = vmatpush1.msra.mxu0 %v1166
        %1608 = vmatprep.subr.mxu0 %v1175
        %1609 = vmatpush1.msra.mxu0 %v1174
        %1610 = vmatprep.subr.mxu0 %v1183
        %1611 = vmatpush1.msra.mxu0 %v1182
        %1612 = vmatprep.subr.mxu0 %v1191
        %1613 = vmatpush1.msra.mxu0 %v1190
        %1614 = vmatprep.subr.mxu0 %v1199
        %1615 = vmatpush1.msra.mxu0 %v1198
        %1616 = vmatprep.subr.mxu0 %v1207
        %1617 = vmatpush1.msra.mxu0 %v1206
        %1618 = vmatprep.subr.mxu0 %v1215
        %1619 = vmatpush1.msra.mxu0 %v1214
        %1620 = vmatprep.subr.mxu0 %v1223
        %1621 = vmatpush1.msra.mxu0 %v1222
        %1622 = vmatprep.subr.mxu0 %v1231
        %1623 = vmatpush1.msra.mxu0 %v1230
        %1624 = vmatprep.subr.mxu0 %v1239
        %1625 = vmatpush1.msra.mxu0 %v1238
        %1626 = vmatprep.subr.mxu0 %v1247
        %1627 = vmatpush1.msra.mxu0 %v1246
        %1628 = vmatprep.mubr.f32.mxu0 %v947
        %1629 = vmatmul.mubr.f32.gmra.mrb[0].mxu0 %v910
        %v1630 = vpop.f32.mrb[0].mxu0
        %v1631 = vadd.f32 %v1393, %v1630
        %v1632 = vpop.f32.mrb[0].mxu0
        %v1633 = vadd.f32 %v1397, %v1632
        %1634 = vdwg.mxu0
        %1635 = vmatprep.subr.mxu0 %v1255
        %1636 = vmatpush1.msra.mxu0 %v1254
        %1637 = vmatprep.subr.mxu0 %v1263
        %1638 = vmatpush1.msra.mxu0 %v1262
        %1639 = vmatprep.subr.mxu0 %v1271
        %1640 = vmatpush1.msra.mxu0 %v1270
        %1641 = vmatprep.subr.mxu0 %v1279
        %1642 = vmatpush1.msra.mxu0 %v1278
        %1643 = vmatprep.subr.mxu0 %v1287
        %1644 = vmatpush1.msra.mxu0 %v1286
        %1645 = vmatprep.subr.mxu0 %v1295
        %1646 = vmatpush1.msra.mxu0 %v1294
        %1647 = vmatprep.subr.mxu0 %v1303
        %1648 = vmatpush1.msra.mxu0 %v1302
        %1649 = vmatprep.subr.mxu0 %v1311
        %1650 = vmatpush1.msra.mxu0 %v1310
        %1651 = vmatprep.subr.mxu0 %v1319
        %1652 = vmatpush1.msra.mxu0 %v1318
        %1653 = vmatprep.subr.mxu0 %v1327
        %1654 = vmatpush1.msra.mxu0 %v1326
        %1655 = vmatprep.subr.mxu0 %v1335
        %1656 = vmatpush1.msra.mxu0 %v1334
        %1657 = vmatprep.subr.mxu0 %v1343
        %1658 = vmatpush1.msra.mxu0 %v1342
        %1659 = vmatprep.subr.mxu0 %v1351
        %1660 = vmatpush1.msra.mxu0 %v1350
        %1661 = vmatprep.subr.mxu0 %v1359
        %1662 = vmatpush1.msra.mxu0 %v1358
        %1663 = vmatprep.subr.mxu0 %v1367
        %1664 = vmatpush1.msra.mxu0 %v1366
        %1665 = vmatprep.subr.mxu0 %v1375
        %1666 = vmatpush1.msra.mxu0 %v1374
        %1667 = vmatprep.subr.mxu0 0.0
        %1668 = vmatpush1.msra.mxu0 0.0
        %1669 = vmatprep.subr.mxu0 0.0
        %1670 = vmatpush1.msra.mxu0 0.0
        %1671 = vmatprep.subr.mxu0 0.0
        %1672 = vmatpush1.msra.mxu0 0.0
        %1673 = vmatprep.subr.mxu0 0.0
        %1674 = vmatpush1.msra.mxu0 0.0
        %1675 = vmatprep.subr.mxu0 0.0
        %1676 = vmatpush1.msra.mxu0 0.0
        %1677 = vmatprep.subr.mxu0 0.0
        %1678 = vmatpush1.msra.mxu0 0.0
        %1679 = vmatprep.subr.mxu0 0.0
        %1680 = vmatpush1.msra.mxu0 0.0
        %1681 = vmatprep.subr.mxu0 0.0
        %1682 = vmatpush1.msra.mxu0 0.0
        %1683 = vmatprep.subr.mxu0 0.0
        %1684 = vmatpush1.msra.mxu0 0.0
        %1685 = vmatprep.subr.mxu0 0.0
        %1686 = vmatpush1.msra.mxu0 0.0
        %1687 = vmatprep.subr.mxu0 0.0
        %1688 = vmatpush1.msra.mxu0 0.0
        %1689 = vmatprep.subr.mxu0 0.0
        %1690 = vmatpush1.msra.mxu0 0.0
        %1691 = vmatprep.subr.mxu0 0.0
        %1692 = vmatpush1.msra.mxu0 0.0
        %1693 = vmatprep.subr.mxu0 0.0
        %1694 = vmatpush1.msra.mxu0 0.0
        %1695 = vmatprep.subr.mxu0 0.0
        %1696 = vmatpush1.msra.mxu0 0.0
        %1697 = vmatprep.subr.mxu0 0.0
        %1698 = vmatpush1.msra.mxu0 0.0
        %1699 = vmatprep.mubr.f32.mxu0 0.0
        %1700 = vmatmul.mubr.f32.gmra.mrb[0].mxu0 %v995
        %v1701 = vpop.f32.mrb[0].mxu0
        %v1702 = vadd.f32 %v1631, %v1701
        %v1703 = vpop.f32.mrb[0].mxu0
        %v1704 = vadd.f32 %v1633, %v1703
        %1705 = vdwg.mxu0
        %1706 = vmatprep.subr.mxu0 %v1001
        %1707 = vmatpush1.msra.mxu0 %v1000
        %1708 = vmatprep.subr.mxu0 %v1009
        %1709 = vmatpush1.msra.mxu0 %v1008
        %1710 = vmatprep.subr.mxu0 %v1017
        %1711 = vmatpush1.msra.mxu0 %v1016
        %1712 = vmatprep.subr.mxu0 %v1025
        %1713 = vmatpush1.msra.mxu0 %v1024
        %1714 = vmatprep.subr.mxu0 %v1033
        %1715 = vmatpush1.msra.mxu0 %v1032
        %1716 = vmatprep.subr.mxu0 %v1041
        %1717 = vmatpush1.msra.mxu0 %v1040
        %1718 = vmatprep.subr.mxu0 %v1049
        %1719 = vmatpush1.msra.mxu0 %v1048
        %1720 = vmatprep.subr.mxu0 %v1057
        %1721 = vmatpush1.msra.mxu0 %v1056
        %1722 = vmatprep.subr.mxu0 %v1065
        %1723 = vmatpush1.msra.mxu0 %v1064
        %1724 = vmatprep.subr.mxu0 %v1073
        %1725 = vmatpush1.msra.mxu0 %v1072
        %1726 = vmatprep.subr.mxu0 %v1081
        %1727 = vmatpush1.msra.mxu0 %v1080
        %1728 = vmatprep.subr.mxu0 %v1089
        %1729 = vmatpush1.msra.mxu0 %v1088
        %1730 = vmatprep.subr.mxu0 %v1097
        %1731 = vmatpush1.msra.mxu0 %v1096
        %1732 = vmatprep.subr.mxu0 %v1105
        %1733 = vmatpush1.msra.mxu0 %v1104
        %1734 = vmatprep.subr.mxu0 %v1113
        %1735 = vmatpush1.msra.mxu0 %v1112
        %1736 = vmatprep.subr.mxu0 %v1121
        %1737 = vmatpush1.msra.mxu0 %v1120
        %1738 = vmatprep.subr.mxu0 %v1129
        %1739 = vmatpush1.msra.mxu0 %v1128
        %1740 = vmatprep.subr.mxu0 %v1137
        %1741 = vmatpush1.msra.mxu0 %v1136
        %1742 = vmatprep.subr.mxu0 %v1145
        %1743 = vmatpush1.msra.mxu0 %v1144
        %1744 = vmatprep.subr.mxu0 %v1153
        %1745 = vmatpush1.msra.mxu0 %v1152
        %1746 = vmatprep.subr.mxu0 %v1161
        %1747 = vmatpush1.msra.mxu0 %v1160
        %1748 = vmatprep.subr.mxu0 %v1169
        %1749 = vmatpush1.msra.mxu0 %v1168
        %1750 = vmatprep.subr.mxu0 %v1177
        %1751 = vmatpush1.msra.mxu0 %v1176
        %1752 = vmatprep.subr.mxu0 %v1185
        %1753 = vmatpush1.msra.mxu0 %v1184
        %1754 = vmatprep.subr.mxu0 %v1193
        %1755 = vmatpush1.msra.mxu0 %v1192
        %1756 = vmatprep.subr.mxu0 %v1201
        %1757 = vmatpush1.msra.mxu0 %v1200
        %1758 = vmatprep.subr.mxu0 %v1209
        %1759 = vmatpush1.msra.mxu0 %v1208
        %1760 = vmatprep.subr.mxu0 %v1217
        %1761 = vmatpush1.msra.mxu0 %v1216
        %1762 = vmatprep.subr.mxu0 %v1225
        %1763 = vmatpush1.msra.mxu0 %v1224
        %1764 = vmatprep.subr.mxu0 %v1233
        %1765 = vmatpush1.msra.mxu0 %v1232
        %1766 = vmatprep.subr.mxu0 %v1241
        %1767 = vmatpush1.msra.mxu0 %v1240
        %1768 = vmatprep.subr.mxu0 %v1249
        %1769 = vmatpush1.msra.mxu0 %v1248
        %1770 = vmatprep.mubr.f32.mxu0 %v947
        %1771 = vmatmul.mubr.f32.gmra.mrb[0].mxu0 %v910
        %v1772 = vpop.f32.mrb[0].mxu0
        %v1773 = vadd.f32 %v1401, %v1772
        %v1774 = vpop.f32.mrb[0].mxu0
        %v1775 = vadd.f32 %v1405, %v1774
        %1776 = vdwg.mxu0
        %1777 = vmatprep.subr.mxu0 %v1257
        %1778 = vmatpush1.msra.mxu0 %v1256
        %1779 = vmatprep.subr.mxu0 %v1265
        %1780 = vmatpush1.msra.mxu0 %v1264
        %1781 = vmatprep.subr.mxu0 %v1273
        %1782 = vmatpush1.msra.mxu0 %v1272
        %1783 = vmatprep.subr.mxu0 %v1281
        %1784 = vmatpush1.msra.mxu0 %v1280
        %1785 = vmatprep.subr.mxu0 %v1289
        %1786 = vmatpush1.msra.mxu0 %v1288
        %1787 = vmatprep.subr.mxu0 %v1297
        %1788 = vmatpush1.msra.mxu0 %v1296
        %1789 = vmatprep.subr.mxu0 %v1305
        %1790 = vmatpush1.msra.mxu0 %v1304
        %1791 = vmatprep.subr.mxu0 %v1313
        %1792 = vmatpush1.msra.mxu0 %v1312
        %1793 = vmatprep.subr.mxu0 %v1321
        %1794 = vmatpush1.msra.mxu0 %v1320
        %1795 = vmatprep.subr.mxu0 %v1329
        %1796 = vmatpush1.msra.mxu0 %v1328
        %1797 = vmatprep.subr.mxu0 %v1337
        %1798 = vmatpush1.msra.mxu0 %v1336
        %1799 = vmatprep.subr.mxu0 %v1345
        %1800 = vmatpush1.msra.mxu0 %v1344
        %1801 = vmatprep.subr.mxu0 %v1353
        %1802 = vmatpush1.msra.mxu0 %v1352
        %1803 = vmatprep.subr.mxu0 %v1361
        %1804 = vmatpush1.msra.mxu0 %v1360
        %1805 = vmatprep.subr.mxu0 %v1369
        %1806 = vmatpush1.msra.mxu0 %v1368
        %1807 = vmatprep.subr.mxu0 %v1377
        %1808 = vmatpush1.msra.mxu0 %v1376
        %1809 = vmatprep.subr.mxu0 0.0
        %1810 = vmatpush1.msra.mxu0 0.0
        %1811 = vmatprep.subr.mxu0 0.0
        %1812 = vmatpush1.msra.mxu0 0.0
        %1813 = vmatprep.subr.mxu0 0.0
        %1814 = vmatpush1.msra.mxu0 0.0
        %1815 = vmatprep.subr.mxu0 0.0
        %1816 = vmatpush1.msra.mxu0 0.0
        %1817 = vmatprep.subr.mxu0 0.0
        %1818 = vmatpush1.msra.mxu0 0.0
        %1819 = vmatprep.subr.mxu0 0.0
        %1820 = vmatpush1.msra.mxu0 0.0
        %1821 = vmatprep.subr.mxu0 0.0
        %1822 = vmatpush1.msra.mxu0 0.0
        %1823 = vmatprep.subr.mxu0 0.0
        %1824 = vmatpush1.msra.mxu0 0.0
        %1825 = vmatprep.subr.mxu0 0.0
        %1826 = vmatpush1.msra.mxu0 0.0
        %1827 = vmatprep.subr.mxu0 0.0
        %1828 = vmatpush1.msra.mxu0 0.0
        %1829 = vmatprep.subr.mxu0 0.0
        %1830 = vmatpush1.msra.mxu0 0.0
        %1831 = vmatprep.subr.mxu0 0.0
        %1832 = vmatpush1.msra.mxu0 0.0
        %1833 = vmatprep.subr.mxu0 0.0
        %1834 = vmatpush1.msra.mxu0 0.0
        %1835 = vmatprep.subr.mxu0 0.0
        %1836 = vmatpush1.msra.mxu0 0.0
        %1837 = vmatprep.subr.mxu0 0.0
        %1838 = vmatpush1.msra.mxu0 0.0
        %1839 = vmatprep.subr.mxu0 0.0
        %1840 = vmatpush1.msra.mxu0 0.0
        %1841 = vmatprep.mubr.f32.mxu0 0.0
        %1842 = vmatmul.mubr.f32.gmra.mrb[0].mxu0 %v995
        %v1843 = vpop.f32.mrb[0].mxu0
        %v1844 = vadd.f32 %v1773, %v1843
        %v1845 = vpop.f32.mrb[0].mxu0
        %v1846 = vadd.f32 %v1775, %v1845
        %1847 = vdwg.mxu0
        %1848 = vmatprep.subr.mxu0 %v1003
        %1849 = vmatpush1.msra.mxu0 %v1002
        %1850 = vmatprep.subr.mxu0 %v1011
        %1851 = vmatpush1.msra.mxu0 %v1010
        %1852 = vmatprep.subr.mxu0 %v1019
        %1853 = vmatpush1.msra.mxu0 %v1018
        %1854 = vmatprep.subr.mxu0 %v1027
        %1855 = vmatpush1.msra.mxu0 %v1026
        %1856 = vmatprep.subr.mxu0 %v1035
        %1857 = vmatpush1.msra.mxu0 %v1034
        %1858 = vmatprep.subr.mxu0 %v1043
        %1859 = vmatpush1.msra.mxu0 %v1042
        %1860 = vmatprep.subr.mxu0 %v1051
        %1861 = vmatpush1.msra.mxu0 %v1050
        %1862 = vmatprep.subr.mxu0 %v1059
        %1863 = vmatpush1.msra.mxu0 %v1058
        %1864 = vmatprep.subr.mxu0 %v1067
        %1865 = vmatpush1.msra.mxu0 %v1066
        %1866 = vmatprep.subr.mxu0 %v1075
        %1867 = vmatpush1.msra.mxu0 %v1074
        %1868 = vmatprep.subr.mxu0 %v1083
        %1869 = vmatpush1.msra.mxu0 %v1082
        %1870 = vmatprep.subr.mxu0 %v1091
        %1871 = vmatpush1.msra.mxu0 %v1090
        %1872 = vmatprep.subr.mxu0 %v1099
        %1873 = vmatpush1.msra.mxu0 %v1098
        %1874 = vmatprep.subr.mxu0 %v1107
        %1875 = vmatpush1.msra.mxu0 %v1106
        %1876 = vmatprep.subr.mxu0 %v1115
        %1877 = vmatpush1.msra.mxu0 %v1114
        %1878 = vmatprep.subr.mxu0 %v1123
        %1879 = vmatpush1.msra.mxu0 %v1122
        %1880 = vmatprep.subr.mxu0 %v1131
        %1881 = vmatpush1.msra.mxu0 %v1130
        %1882 = vmatprep.subr.mxu0 %v1139
        %1883 = vmatpush1.msra.mxu0 %v1138
        %1884 = vmatprep.subr.mxu0 %v1147
        %1885 = vmatpush1.msra.mxu0 %v1146
        %1886 = vmatprep.subr.mxu0 %v1155
        %1887 = vmatpush1.msra.mxu0 %v1154
        %1888 = vmatprep.subr.mxu0 %v1163
        %1889 = vmatpush1.msra.mxu0 %v1162
        %1890 = vmatprep.subr.mxu0 %v1171
        %1891 = vmatpush1.msra.mxu0 %v1170
        %1892 = vmatprep.subr.mxu0 %v1179
        %1893 = vmatpush1.msra.mxu0 %v1178
        %1894 = vmatprep.subr.mxu0 %v1187
        %1895 = vmatpush1.msra.mxu0 %v1186
        %1896 = vmatprep.subr.mxu0 %v1195
        %1897 = vmatpush1.msra.mxu0 %v1194
        %1898 = vmatprep.subr.mxu0 %v1203
        %1899 = vmatpush1.msra.mxu0 %v1202
        %1900 = vmatprep.subr.mxu0 %v1211
        %1901 = vmatpush1.msra.mxu0 %v1210
        %1902 = vmatprep.subr.mxu0 %v1219
        %1903 = vmatpush1.msra.mxu0 %v1218
        %1904 = vmatprep.subr.mxu0 %v1227
        %1905 = vmatpush1.msra.mxu0 %v1226
        %1906 = vmatprep.subr.mxu0 %v1235
        %1907 = vmatpush1.msra.mxu0 %v1234
        %1908 = vmatprep.subr.mxu0 %v1243
        %1909 = vmatpush1.msra.mxu0 %v1242
        %1910 = vmatprep.subr.mxu0 %v1251
        %1911 = vmatpush1.msra.mxu0 %v1250
        %1912 = vmatprep.mubr.f32.mxu0 %v947
        %1913 = vmatmul.mubr.f32.gmra.mrb[0].mxu0 %v910
        %v1914 = vpop.f32.mrb[0].mxu0
        %v1915 = vadd.f32 %v1409, %v1914
        %v1916 = vpop.f32.mrb[0].mxu0
        %v1917 = vadd.f32 %v1413, %v1916
        %1918 = vdwg.mxu0
        %1919 = vmatprep.subr.mxu0 %v1259
        %1920 = vmatpush1.msra.mxu0 %v1258
        %1921 = vmatprep.subr.mxu0 %v1267
        %1922 = vmatpush1.msra.mxu0 %v1266
        %1923 = vmatprep.subr.mxu0 %v1275
        %1924 = vmatpush1.msra.mxu0 %v1274
        %1925 = vmatprep.subr.mxu0 %v1283
        %1926 = vmatpush1.msra.mxu0 %v1282
        %1927 = vmatprep.subr.mxu0 %v1291
        %1928 = vmatpush1.msra.mxu0 %v1290
        %1929 = vmatprep.subr.mxu0 %v1299
        %1930 = vmatpush1.msra.mxu0 %v1298
        %1931 = vmatprep.subr.mxu0 %v1307
        %1932 = vmatpush1.msra.mxu0 %v1306
        %1933 = vmatprep.subr.mxu0 %v1315
        %1934 = vmatpush1.msra.mxu0 %v1314
        %1935 = vmatprep.subr.mxu0 %v1323
        %1936 = vmatpush1.msra.mxu0 %v1322
        %1937 = vmatprep.subr.mxu0 %v1331
        %1938 = vmatpush1.msra.mxu0 %v1330
        %1939 = vmatprep.subr.mxu0 %v1339
        %1940 = vmatpush1.msra.mxu0 %v1338
        %1941 = vmatprep.subr.mxu0 %v1347
        %1942 = vmatpush1.msra.mxu0 %v1346
        %1943 = vmatprep.subr.mxu0 %v1355
        %1944 = vmatpush1.msra.mxu0 %v1354
        %1945 = vmatprep.subr.mxu0 %v1363
        %1946 = vmatpush1.msra.mxu0 %v1362
        %1947 = vmatprep.subr.mxu0 %v1371
        %1948 = vmatpush1.msra.mxu0 %v1370
        %1949 = vmatprep.subr.mxu0 %v1379
        %1950 = vmatpush1.msra.mxu0 %v1378
        %1951 = vmatprep.subr.mxu0 0.0
        %1952 = vmatpush1.msra.mxu0 0.0
        %1953 = vmatprep.subr.mxu0 0.0
        %1954 = vmatpush1.msra.mxu0 0.0
        %1955 = vmatprep.subr.mxu0 0.0
        %1956 = vmatpush1.msra.mxu0 0.0
        %1957 = vmatprep.subr.mxu0 0.0
        %1958 = vmatpush1.msra.mxu0 0.0
        %1959 = vmatprep.subr.mxu0 0.0
        %1960 = vmatpush1.msra.mxu0 0.0
        %1961 = vmatprep.subr.mxu0 0.0
        %1962 = vmatpush1.msra.mxu0 0.0
        %1963 = vmatprep.subr.mxu0 0.0
        %1964 = vmatpush1.msra.mxu0 0.0
        %1965 = vmatprep.subr.mxu0 0.0
        %1966 = vmatpush1.msra.mxu0 0.0
        %1967 = vmatprep.subr.mxu0 0.0
        %1968 = vmatpush1.msra.mxu0 0.0
        %1969 = vmatprep.subr.mxu0 0.0
        %1970 = vmatpush1.msra.mxu0 0.0
        %1971 = vmatprep.subr.mxu0 0.0
        %1972 = vmatpush1.msra.mxu0 0.0
        %1973 = vmatprep.subr.mxu0 0.0
        %1974 = vmatpush1.msra.mxu0 0.0
        %1975 = vmatprep.subr.mxu0 0.0
        %1976 = vmatpush1.msra.mxu0 0.0
        %1977 = vmatprep.subr.mxu0 0.0
        %1978 = vmatpush1.msra.mxu0 0.0
        %1979 = vmatprep.subr.mxu0 0.0
        %1980 = vmatpush1.msra.mxu0 0.0
        %1981 = vmatprep.subr.mxu0 0.0
        %1982 = vmatpush1.msra.mxu0 0.0
        %1983 = vmatprep.mubr.f32.mxu0 0.0
        %1984 = vmatmul.mubr.f32.gmra.mrb[0].mxu0 %v995
        %v1985 = vpop.f32.mrb[0].mxu0
        %v1986 = vadd.f32 %v1915, %v1985
        %v1987 = vpop.f32.mrb[0].mxu0
        %v1988 = vadd.f32 %v1917, %v1987
        %1989 = vdwg.mxu0
        %v1990 = vmax.f32 %v1986, 0.0
        %v1991 = vmax.f32 %v1988, 0.0
        %v1992 = vmax.f32 %v1560, 0.0
        %v1993 = vmax.f32 %v1562, 0.0
        %v1994 = vsel %vm875, %v1702, -inf
        %1995 = vmax.xlane.f32.xlu0 %v1994
        %v1996 = vpop.xlane.xlu0 %1995
        %v1997 = vsub.f32 %v1702, %v1996
        %v1998 = vmul.f32 %v1997, 1.442695
        %v1999 = vpow.pop %v1998
        %v2000 = vsel %vm875, %v1999, 0.0
        %2001 = vadd.xlane.f32.xlu0 %v2000
        %v2002 = vpop.xlane.xlu0 %2001
        %v2003 = vrcp.pop %v2002
        %v2004 = vmul.f32 %v1999, %v2003
        %2006 = vset.pattern.permute.xlu0 0
        %2007 = vperm.xlu0 %2006, %v2004
        %v2008 = vpop.permute.xlu0 %2007
        %v2010 = vmul.f32 %v2008, %v1992
        %2011 = vset.pattern.permute.xlu0 1
        %2012 = vperm.xlu0 %2011, %v2004
        %v2013 = vpop.permute.xlu0 %2012
        %v2015 = vmul.f32 %v2013, %v1993
        %v2016 = vadd.f32 %v2010, %v2015
        %2017 = vset.pattern.permute.xlu0 2
        %2018 = vperm.xlu0 %2017, %v2004
        %v2019 = vpop.permute.xlu0 %2018
        %v2021 = vmul.f32 %v2019, %v1990
        %v2022 = vadd.f32 %v2016, %v2021
        %2023 = vset.pattern.permute.xlu0 3
        %2024 = vperm.xlu0 %2023, %v2004
        %v2025 = vpop.permute.xlu0 %2024
        %v2027 = vmul.f32 %v2025, %v1991
        %v2028 = vadd.f32 %v2022, %v2027
        %v2029 = vmax.f32 %v1704, 0.0
        %v2030 = vmax.f32 %v1844, 0.0
        %v2031 = vsel %vm875, %v1846, -inf
        %2032 = vmax.xlane.f32.xlu0 %v2031
        %v2033 = vpop.xlane.xlu0 %2032
        %v2034 = vsub.f32 %v1846, %v2033
        %v2035 = vmul.f32 %v2034, 1.442695
        %v2036 = vpow.pop %v2035
        %v2037 = vsel %vm875, %v2036, 0.0
        %2038 = vadd.xlane.f32.xlu0 %v2037
        %v2039 = vpop.xlane.xlu0 %2038
        %v2040 = vrcp.pop %v2039
        %v2041 = vmul.f32 %v2036, %v2040
        %2043 = vset.pattern.permute.xlu0 0
        %2044 = vperm.xlu0 %2043, %v2041
        %v2045 = vpop.permute.xlu0 %2044
        %v2047 = vmul.f32 %v2045, %v2029
        %2048 = vset.pattern.permute.xlu0 1
        %2049 = vperm.xlu0 %2048, %v2041
        %v2050 = vpop.permute.xlu0 %2049
        %v2052 = vmul.f32 %v2050, %v2030
        %v2053 = vadd.f32 %v2047, %v2052
        %2054 = vset.pattern.permute.xlu0 2
        %2055 = vperm.xlu0 %2054, %v2041
        %v2056 = vpop.permute.xlu0 %2055
        %v2058 = vmul.f32 %v2056, %v1990
        %v2059 = vadd.f32 %v2053, %v2058
        %2060 = vset.pattern.permute.xlu0 3
        %2061 = vperm.xlu0 %2060, %v2041
        %v2062 = vpop.permute.xlu0 %2061
        %v2064 = vmul.f32 %v2062, %v1991
        %v2065 = vadd.f32 %v2059, %v2064
        %v2066 = vld [vmem:[%s5] sm:$0xff]
        %v2067 = vld [vmem:[%s5 + $0x8] sm:$0xff]
        %v2068 = vld [vmem:[%s5 + $0x10] sm:$0xff]
        %v2069 = vld [vmem:[%s5 + $0x18] sm:$0xff]
        %v2070 = vld [vmem:[%s5 + $0x20] sm:$0xff]
        %v2071 = vld [vmem:[%s5 + $0x28] sm:$0xff]
        %v2072 = vld [vmem:[%s5 + $0x30] sm:$0xff]
        %v2073 = vld [vmem:[%s5 + $0x38] sm:$0xff]
        %v2074 = vld [vmem:[%s5 + $0x40] sm:$0xff]
        %v2075 = vld [vmem:[%s5 + $0x48] sm:$0xff]
        %v2076 = vld [vmem:[%s5 + $0x50] sm:$0xff]
        %v2077 = vld [vmem:[%s5 + $0x58] sm:$0xff]
        %v2078 = vld [vmem:[%s5 + $0x60] sm:$0xff]
        %v2079 = vld [vmem:[%s5 + $0x68] sm:$0xff]
        %v2080 = vld [vmem:[%s5 + $0x70] sm:$0xff]
        %v2081 = vld [vmem:[%s5 + $0x78] sm:$0xff]
        %v2082 = vld [vmem:[%s5 + $0x80] sm:$0xff]
        %v2083 = vld [vmem:[%s5 + $0x88] sm:$0xff]
        %v2084 = vld [vmem:[%s5 + $0x90] sm:$0xff]
        %v2085 = vld [vmem:[%s5 + $0x98] sm:$0xff]
        %v2086 = vld [vmem:[%s5 + $0xa0] sm:$0xff]
        %v2087 = vld [vmem:[%s5 + $0xa8] sm:$0xff]
        %v2088 = vld [vmem:[%s5 + $0xb0] sm:$0xff]
        %v2089 = vld [vmem:[%s5 + $0xb8] sm:$0xff]
        %v2090 = vld [vmem:[%s5 + $0xc0] sm:$0xff]
        %v2091 = vld [vmem:[%s5 + $0xc8] sm:$0xff]
        %v2092 = vld [vmem:[%s5 + $0xd0] sm:$0xff]
        %v2093 = vld [vmem:[%s5 + $0xd8] sm:$0xff]
        %v2094 = vld [vmem:[%s5 + $0xe0] sm:$0xff]
        %v2095 = vld [vmem:[%s5 + $0xe8] sm:$0xff]
        %v2096 = vld [vmem:[%s5 + $0xf0] sm:$0xff]
        %v2097 = vld [vmem:[%s5 + $0xf8] sm:$0xff]
        %v2098 = vld [vmem:[#allocation10] sm:$0x1]
        %v2100 = vlaneseq
        %v2101 = vshrl.u32 %v2100, 7
        %v2102 = vsub.s32 0, %v2101
        %v2103 = vrot.slane %v2098, %v2102
        %2105 = vmatprep.subr.mxu0 0.0
        %2106 = vmatpush1.msra.mxu0 %v2066
        %2107 = vmatprep.subr.mxu0 0.0
        %2108 = vmatpush1.msra.mxu0 %v2067
        %2109 = vmatprep.subr.mxu0 0.0
        %2110 = vmatpush1.msra.mxu0 %v2068
        %2111 = vmatprep.subr.mxu0 0.0
        %2112 = vmatpush1.msra.mxu0 %v2069
        %2113 = vmatprep.subr.mxu0 0.0
        %2114 = vmatpush1.msra.mxu0 %v2070
        %2115 = vmatprep.subr.mxu0 0.0
        %2116 = vmatpush1.msra.mxu0 %v2071
        %2117 = vmatprep.subr.mxu0 0.0
        %2118 = vmatpush1.msra.mxu0 %v2072
        %2119 = vmatprep.subr.mxu0 0.0
        %2120 = vmatpush1.msra.mxu0 %v2073
        %2121 = vmatprep.subr.mxu0 0.0
        %2122 = vmatpush1.msra.mxu0 %v2074
        %2123 = vmatprep.subr.mxu0 0.0
        %2124 = vmatpush1.msra.mxu0 %v2075
        %2125 = vmatprep.subr.mxu0 0.0
        %2126 = vmatpush1.msra.mxu0 %v2076
        %2127 = vmatprep.subr.mxu0 0.0
        %2128 = vmatpush1.msra.mxu0 %v2077
        %2129 = vmatprep.subr.mxu0 0.0
        %2130 = vmatpush1.msra.mxu0 %v2078
        %2131 = vmatprep.subr.mxu0 0.0
        %2132 = vmatpush1.msra.mxu0 %v2079
        %2133 = vmatprep.subr.mxu0 0.0
        %2134 = vmatpush1.msra.mxu0 %v2080
        %2135 = vmatprep.subr.mxu0 0.0
        %2136 = vmatpush1.msra.mxu0 %v2081
        %2137 = vmatprep.subr.mxu0 0.0
        %2138 = vmatpush1.msra.mxu0 %v2082
        %2139 = vmatprep.subr.mxu0 0.0
        %2140 = vmatpush1.msra.mxu0 %v2083
        %2141 = vmatprep.subr.mxu0 0.0
        %2142 = vmatpush1.msra.mxu0 %v2084
        %2143 = vmatprep.subr.mxu0 0.0
        %2144 = vmatpush1.msra.mxu0 %v2085
        %2145 = vmatprep.subr.mxu0 0.0
        %2146 = vmatpush1.msra.mxu0 %v2086
        %2147 = vmatprep.subr.mxu0 0.0
        %2148 = vmatpush1.msra.mxu0 %v2087
        %2149 = vmatprep.subr.mxu0 0.0
        %2150 = vmatpush1.msra.mxu0 %v2088
        %2151 = vmatprep.subr.mxu0 0.0
        %2152 = vmatpush1.msra.mxu0 %v2089
        %2153 = vmatprep.subr.mxu0 0.0
        %2154 = vmatpush1.msra.mxu0 %v2090
        %2155 = vmatprep.subr.mxu0 0.0
        %2156 = vmatpush1.msra.mxu0 %v2091
        %2157 = vmatprep.subr.mxu0 0.0
        %2158 = vmatpush1.msra.mxu0 %v2092
        %2159 = vmatprep.subr.mxu0 0.0
        %2160 = vmatpush1.msra.mxu0 %v2093
        %2161 = vmatprep.subr.mxu0 0.0
        %2162 = vmatpush1.msra.mxu0 %v2094
        %2163 = vmatprep.subr.mxu0 0.0
        %2164 = vmatpush1.msra.mxu0 %v2095
        %2165 = vmatprep.subr.mxu0 0.0
        %2166 = vmatpush1.msra.mxu0 %v2096
        %2167 = vmatprep.subr.mxu0 0.0
        %2168 = vmatpush1.msra.mxu0 %v2097
        %2169 = vmatprep.mubr.f32.mxu0 %v2065
        %2170 = vmatmul.mubr.f32.gmra.mrb[0].mxu0 %v2028
        %v2171 = vpop.f32.mrb[0].mxu0
        %v2172 = vadd.f32 %v2103, %v2171
        %v2173 = vpop.f32.mrb[0].mxu0
        %2174 = vdwg.mxu0
        %v2175 = vmax.f32 %v2172, 0.0
        %v2176 = vld [vmem:[%s7] sm:$0xff]
        %v2177 = vld [vmem:[%s7 + $0x8] sm:$0xff]
        %v2178 = vld [vmem:[%s7 + $0x10] sm:$0xff]
        %v2179 = vld [vmem:[%s7 + $0x18] sm:$0xff]
        %v2180 = vld [vmem:[#allocation12] sm:$0x1]
        %v2182 = vlaneseq
        %v2183 = vshrl.u32 %v2182, 7
        %v2184 = vsub.s32 0, %v2183
        %v2185 = vrot.slane %v2180, %v2184
        %v2188 = vsel %vm513, %v2175, 0
        %2190 = vmatprep.subr.mxu0 0.0
        %2191 = vmatpush1.msra.mxu0 %v2176
        %2192 = vmatprep.subr.mxu0 0.0
        %2193 = vmatpush1.msra.mxu0 %v2177
        %2194 = vmatprep.subr.mxu0 0.0
        %2195 = vmatpush1.msra.mxu0 %v2178
        %2196 = vmatprep.subr.mxu0 0.0
        %2197 = vmatpush1.msra.mxu0 %v2179
        %2198 = vmatprep.subr.mxu0 0.0
        %2199 = vmatpush1.msra.mxu0 0.0
        %2200 = vmatprep.subr.mxu0 0.0
        %2201 = vmatpush1.msra.mxu0 0.0
        %2202 = vmatprep.subr.mxu0 0.0
        %2203 = vmatpush1.msra.mxu0 0.0
        %2204 = vmatprep.subr.mxu0 0.0
        %2205 = vmatpush1.msra.mxu0 0.0
        %2206 = vmatprep.subr.mxu0 0.0
        %2207 = vmatpush1.msra.mxu0 0.0
        %2208 = vmatprep.subr.mxu0 0.0
        %2209 = vmatpush1.msra.mxu0 0.0
        %2210 = vmatprep.subr.mxu0 0.0
        %2211 = vmatpush1.msra.mxu0 0.0
        %2212 = vmatprep.subr.mxu0 0.0
        %2213 = vmatpush1.msra.mxu0 0.0
        %2214 = vmatprep.subr.mxu0 0.0
        %2215 = vmatpush1.msra.mxu0 0.0
        %2216 = vmatprep.subr.mxu0 0.0
        %2217 = vmatpush1.msra.mxu0 0.0
        %2218 = vmatprep.subr.mxu0 0.0
        %2219 = vmatpush1.msra.mxu0 0.0
        %2220 = vmatprep.subr.mxu0 0.0
        %2221 = vmatpush1.msra.mxu0 0.0
        %2222 = vmatprep.subr.mxu0 0.0
        %2223 = vmatpush1.msra.mxu0 0.0
        %2224 = vmatprep.subr.mxu0 0.0
        %2225 = vmatpush1.msra.mxu0 0.0
        %2226 = vmatprep.subr.mxu0 0.0
        %2227 = vmatpush1.msra.mxu0 0.0
        %2228 = vmatprep.subr.mxu0 0.0
        %2229 = vmatpush1.msra.mxu0 0.0
        %2230 = vmatprep.subr.mxu0 0.0
        %2231 = vmatpush1.msra.mxu0 0.0
        %2232 = vmatprep.subr.mxu0 0.0
        %2233 = vmatpush1.msra.mxu0 0.0
        %2234 = vmatprep.subr.mxu0 0.0
        %2235 = vmatpush1.msra.mxu0 0.0
        %2236 = vmatprep.subr.mxu0 0.0
        %2237 = vmatpush1.msra.mxu0 0.0
        %2238 = vmatprep.subr.mxu0 0.0
        %2239 = vmatpush1.msra.mxu0 0.0
        %2240 = vmatprep.subr.mxu0 0.0
        %2241 = vmatpush1.msra.mxu0 0.0
        %2242 = vmatprep.subr.mxu0 0.0
        %2243 = vmatpush1.msra.mxu0 0.0
        %2244 = vmatprep.subr.mxu0 0.0
        %2245 = vmatpush1.msra.mxu0 0.0
        %2246 = vmatprep.subr.mxu0 0.0
        %2247 = vmatpush1.msra.mxu0 0.0
        %2248 = vmatprep.subr.mxu0 0.0
        %2249 = vmatpush1.msra.mxu0 0.0
        %2250 = vmatprep.subr.mxu0 0.0
        %2251 = vmatpush1.msra.mxu0 0.0
        %2252 = vmatprep.subr.mxu0 0.0
        %2253 = vmatpush1.msra.mxu0 0.0
        %2254 = vmatprep.mubr.f32.mxu0 0.0
        %2255 = vmatmul.mubr.f32.gmra.mrb[0].mxu0 %v2188
        %v2256 = vpop.f32.mrb[0].mxu0
        %v2257 = vadd.f32 %v2185, %v2256
        %v2258 = vpop.f32.mrb[0].mxu0
        %2259 = vdwg.mxu0
        %vm2260 = vcmask 15360
        %2261 = vst.msk [vmem:[%s426] sm:$0xff] %vm2260, %v2257
        %p2262 = scmp.lt.s32.totalorder %s26, 1
        %s2263 = scalar_select %p2262, %s26, 1
        %s2264 = smul.addr %s2263, 8
        %s2265 = scalar_lea.vmem %s9, %s2264
        // Predicated region
        $region85: #{tpu_custom_call.1} parent=55 // pred_check
          %p2266 = pneg %p238
        $region86: #{tpu_custom_call.1} parent=55 // pred_check_branch
          %2268 = sbr.rel (%p2266) target = $region88
        $region87: #{tpu_custom_call.1} parent=55 // pred_region
          _
        $region88: #{tpu_custom_call.1} parent=55 // pred_fallthru
          _
      $region56: #{tpu_custom_call.1} parent=5 // pred_fallthru
        _
      %p2269 = scmp.le.s32.totalorder 2, %s21
      // Predicated region
      $region89: #{tpu_custom_call.1} parent=5 // pred_check
        %p2270 = pneg %p2269
      $region90: #{tpu_custom_call.1} parent=5 // pred_check_branch
        %2272 = sbr.rel (%p2270) target = $region92
      $region91: #{tpu_custom_call.1} parent=5 // pred_region
        %s2273 = ssub.s32 %s21, 2
        // Predicated region
        $region93: #{tpu_custom_call.1} parent=91 // pred_check
          %p2274 = pneg %p244
        $region94: #{tpu_custom_call.1} parent=91 // pred_check_branch
          %2276 = sbr.rel (%p2274) target = $region96
        $region95: #{tpu_custom_call.1} parent=91 // pred_region
          %p2277 = scmp.lt.s32.totalorder %s27, 1
          %s2278 = scalar_select %p2277, %s27, 1
          %s2279 = smul.addr %s2278, 8
          %s2280 = scalar_lea.vmem %s9, %s2279
        $region96: #{tpu_custom_call.1} parent=91 // pred_fallthru
          _
      $region92: #{tpu_custom_call.1} parent=5 // pred_fallthru
        _
    $region6: #{tpu_custom_call.1} parent=1 // loop_footer
      %s25 = sadd.s32 1, %s21
    $region7: #{tpu_custom_call.1} parent=1 // loop_footer_branch
      %20 = sbr.rel target = $region3
    $region8: #{tpu_custom_call.1} parent=1 // loop_exit
      _
    %2281 = vsyncpa [#allocation3], 1
    %s2282 = scalar_lea.sflag [#allocation3], 1
    %2283 = vsyncpa %s2282, 1
    %2284 = vsyncpa [#allocation5], 1
    %2285 = vsyncpa [#allocation8], 1
    %2286 = vsyncpa [#allocation11], 1

</llo_original>
